<compile_context>
chip_gen: v6e
topology: v6e:2x2x1
jax: 0.10.0
libtpu: 0.0.40
codegen_flags: <defaults>
</compile_context>

<pallas_src>
import functools

import jax
import jax.numpy as jnp
from jax.experimental import pallas as pl
from jax.experimental.pallas import tpu as pltpu


# ----------------------------------------------------------------------------
# Fused kernel: one grid step = TB images.
# Activation layout: (spatial_y, TB, folded_width) with folded_width = c*W + x.
# ----------------------------------------------------------------------------
def _m2_fused_kernel(x_ref, g1_ref, b1_ref, g2_ref, b2_ref, wfc_ref, bfc_ref,
                     o_ref):
    f32 = jnp.float32
    tb = x_ref.shape[1]

    # --- Conv1 (5x5, 1->4) + bias + Square -----------------------------------
    # Rows-only im2col: concat the 5 row-shifted views along lanes -> K = 140.
    c1 = jnp.concatenate([x_ref[i:i + 24] for i in range(5)], axis=-1)
    c1 = c1.reshape(24 * tb, 5 * 28)                              # (24*TB, 140)
    s1 = jnp.dot(c1, g1_ref[...], preferred_element_type=f32)     # (24*TB, 96)
    s1 = s1 + b1_ref[...]
    s1 = s1 * s1                                                  # Square1
    s1 = s1.reshape(24, tb, 96)

    # --- AvgPool1: rows via leading-axis pair-sum; columns folded into g2 ----
    p1 = s1.reshape(12, 2, tb, 96).sum(axis=1) * 0.5              # (12, TB, 96)

    # --- Conv2 (5x5, 4->12) + bias + Square (col-pool of layer1 pre-folded) --
    c2 = jnp.concatenate([p1[i:i + 8] for i in range(5)], axis=-1)
    c2 = c2.reshape(8 * tb, 5 * 96)                               # (8*TB, 480)
    s2 = jnp.dot(c2, g2_ref[...], preferred_element_type=f32)     # (8*TB, 96)
    s2 = s2 + b2_ref[...]
    s2 = s2 * s2                                                  # Square2
    s2 = s2.reshape(8, tb, 96)

    # --- AvgPool2: rows here; its column pool is folded into the FC weight ---
    p2 = s2.reshape(4, 2, tb, 96).sum(axis=1) * 0.5               # (4, TB, 96)

    # --- Flatten + FC1 (192 -> 10): bias folded into the accumulator init ----
    acc = bfc_ref[...] + jnp.dot(p2[0], wfc_ref[0], preferred_element_type=f32)
    for y in range(1, 4):
        acc = acc + jnp.dot(p2[y], wfc_ref[y], preferred_element_type=f32)

    o_ref[...] = acc.astype(o_ref.dtype)                          # (TB, 10)


# ----------------------------------------------------------------------------
# Init-time weight preprocessing (runs once, outside the kernel).
# ----------------------------------------------------------------------------
def _fold_conv_weight(w, w_in):
    """w: (O, C, kh, kw) -> (kh, C*w_in, O*w_out) so that
    conv_out[y, o*w_out + xo] = sum_i (act[y+i, :] @ G[i])[o*w_out + xo],
    where act columns are laid out c*w_in + x_in."""
    O, C, kh, kw = w.shape
    w_out = w_in - kw + 1
    xi = jnp.arange(w_in)[:, None]
    xo = jnp.arange(w_out)[None, :]
    diff = xi - xo
    mask = (diff >= 0) & (diff < kw)
    dclip = jnp.clip(diff, 0, kw - 1)
    taps = w[:, :, :, dclip]                                 # (O, C, kh, w_in, w_out)
    taps = jnp.where(mask[None, None, None], taps, 0.0)
    g = taps.transpose(2, 1, 3, 0, 4).reshape(kh, C * w_in, O * w_out)
    return g.astype(jnp.float32)


def _fold_colpool_into_next(g, channels):
    """Exact fold of a width-direction 2x avg-pool into the NEXT layer's weight.

    g consumes columns laid out (channel-major, pooled width w); return a
    matrix consuming (channel-major, unpooled width 2w) columns: each pooled
    tap is duplicated to its two source columns with weight 0.5."""
    *lead, cw, n = g.shape
    w = cw // channels
    g = g.reshape(*lead, channels, w, n)
    g = jnp.repeat(g, 2, axis=len(lead) + 1) * 0.5
    return g.reshape(*lead, channels * 2 * w, n)


def prepare_params(params):
    (w1, b1), (w2, b2), (wfc, bfc) = params["conv1"], params["conv2"], params["fc1"]

    g1 = _fold_conv_weight(w1, 28)                           # (5, 28, 96)
    g2 = _fold_conv_weight(w2, 12)                           # (5, 48, 96)

    # Conv1: concat the 5 taps along K -> (140, 96).
    g1cat = g1.reshape(5 * 28, 96)
    # Conv2: fold AvgPool1's column pool in (48 -> 96 input cols), concat taps.
    g2cat = _fold_colpool_into_next(g2, channels=4).reshape(5 * 96, 96)  # (480, 96)

    # Biases replicated across the folded width (o-major layout).
    b1f = jnp.repeat(b1, 24).reshape(1, 96).astype(jnp.float32)
    b2f = jnp.repeat(b2, 8).reshape(1, 96).astype(jnp.float32)

    # FC1 weight: torch flatten order (c, y, x_pooled) -> internal (y, c*4+x),
    # then fold AvgPool2's column pool in (48 -> 96 input cols per y).
    wfc_int = wfc.reshape(10, 12, 4, 4).transpose(2, 1, 3, 0).reshape(4, 48, 10)
    wfcf = _fold_colpool_into_next(wfc_int, channels=12)     # (4, 96, 10)

    return {"g1": g1cat.astype(jnp.float32), "b1": b1f,
            "g2": g2cat.astype(jnp.float32), "b2": b2f,
            "wfc": wfcf.astype(jnp.float32),
            "bfc": bfc.reshape(1, 10).astype(jnp.float32)}


# ----------------------------------------------------------------------------
# Fused forward (batch-blocked).
# ----------------------------------------------------------------------------
def _round_up(x, m):
    return ((x + m - 1) // m) * m


@functools.partial(jax.jit, static_argnames=("block_b",))
def m2_forward(x, prep, block_b=128):
    B = x.shape[0]
    # y-leading, batch second-minor layout: (28, B, 28).  Done once in XLA.
    xt = jnp.transpose(x.reshape(B, 28, 28), (1, 0, 2))
    tb = _round_up(min(block_b, _round_up(B, 8)), 8)
    bp = _round_up(B, tb)
    if bp != B:
        xt = jnp.pad(xt, ((0, 0), (0, bp - B), (0, 0)))

    out = pl.pallas_call(
        _m2_fused_kernel,
        out_shape=jax.ShapeDtypeStruct((bp, 10), jnp.float32),
        grid=(bp // tb,),
        in_specs=[
            pl.BlockSpec((28, tb, 28), lambda b: (0, b, 0)),   # x block
            pl.BlockSpec((140, 96), lambda b: (0, 0)),         # g1 (tap-concat)
            pl.BlockSpec((1, 96), lambda b: (0, 0)),           # b1
            pl.BlockSpec((480, 96), lambda b: (0, 0)),         # g2 (pool-folded)
            pl.BlockSpec((1, 96), lambda b: (0, 0)),           # b2
            pl.BlockSpec((4, 96, 10), lambda b: (0, 0, 0)),    # fc weight
            pl.BlockSpec((1, 10), lambda b: (0, 0)),           # fc bias
        ],
        out_specs=pl.BlockSpec((tb, 10), lambda b: (b, 0)),
        compiler_params=pltpu.CompilerParams(
            dimension_semantics=("parallel",)),
    )(xt, prep["g1"], prep["b1"], prep["g2"], prep["b2"],
      prep["wfc"], prep["bfc"])
    return out[:B]


# ----------------------------------------------------------------------------
# Parameter init (PyTorch-default-like uniform) and pure-JAX reference.
# ----------------------------------------------------------------------------
def _init_conv(key, out_c, in_c, k):
    k1, k2 = jax.random.split(key)
    bound = 1.0 / ((in_c * k * k) ** 0.5)
    w = jax.random.uniform(k1, (out_c, in_c, k, k), jnp.float32, -bound, bound)
    b = jax.random.uniform(k2, (out_c,), jnp.float32, -bound, bound)
    return w, b


def _init_linear(key, out_f, in_f):
    k1, k2 = jax.random.split(key)
    bound = 1.0 / (in_f ** 0.5)
    w = jax.random.uniform(k1, (out_f, in_f), jnp.float32, -bound, bound)
    b = jax.random.uniform(k2, (out_f,), jnp.float32, -bound, bound)
    return w, b


def init_params(key):
    ks = jax.random.split(key, 3)
    return {
        "conv1": _init_conv(ks[0], 4, 1, 5),
        "conv2": _init_conv(ks[1], 12, 4, 5),
        "fc1": _init_linear(ks[2], 10, 192),
    }


def m2_reference(x, params):
    (w1, b1), (w2, b2), (wfc, bfc) = params["conv1"], params["conv2"], params["fc1"]
    hi = jax.lax.Precision.HIGHEST

    def conv(x, w, b):
        y = jax.lax.conv_general_dilated(
            x, w, window_strides=(1, 1), padding="VALID",
            dimension_numbers=("NCHW", "OIHW", "NCHW"), precision=hi)
        return y + b.reshape(1, -1, 1, 1)

    def pool(x):
        B, C, H, W = x.shape
        return x.reshape(B, C, H // 2, 2, W // 2, 2).mean(axis=(3, 5))

    out = conv(x, w1, b1) ** 2                               # Conv1 + Square1
    out = pool(out)                                          # AvgPool1
    out = conv(out, w2, b2) ** 2                             # Conv2 + Square2
    out = pool(out)                                          # AvgPool2
    out = out.reshape(out.shape[0], -1)                      # Flatten
    return jnp.dot(out, wfc.T, precision=hi) + bfc           # FC1


if __name__ == "__main__":
    key = jax.random.PRNGKey(0)
    kx, kp, kx2 = jax.random.split(key, 3)

    params = init_params(kp)
    prep = prepare_params(params)

    # Small batch (shapes implied by the module: 1x28x28 input -> 192-feat FC).
    x = jax.random.normal(kx, (2, 1, 28, 28), dtype=jnp.float32)
    out = jax.block_until_ready(m2_forward(x, prep))
    ref = m2_reference(x, params)
    assert out.shape == (2, 10), out.shape
    assert jnp.allclose(out, ref, rtol=5e-3, atol=1e-3), (
        "mismatch (B=2); max abs err = %g" % float(jnp.max(jnp.abs(out - ref))))

    # Larger batch exercising multi-step grid, batch blocking and padding.
    x2 = jax.random.normal(kx2, (200, 1, 28, 28), dtype=jnp.float32)
    out2 = jax.block_until_ready(m2_forward(x2, prep))
    ref2 = m2_reference(x2, params)
    assert out2.shape == (200, 10), out2.shape
    assert jnp.allclose(out2, ref2, rtol=5e-3, atol=1e-3), (
        "mismatch (B=200); max abs err = %g" % float(jnp.max(jnp.abs(out2 - ref2))))

    print("KERNEL_OK")
</pallas_src>

<mosaic_0001>
module attributes {stable_mosaic.version = 11 : i64} {
  func.func @_m2_fused_kernel(%arg0: i32, %arg1: memref<28x8x28xf32, #tpu.memory_space<vmem>>, %arg2: memref<140x96xf32, #tpu.memory_space<vmem>>, %arg3: memref<1x96xf32, #tpu.memory_space<vmem>>, %arg4: memref<480x96xf32, #tpu.memory_space<vmem>>, %arg5: memref<1x96xf32, #tpu.memory_space<vmem>>, %arg6: memref<4x96x10xf32, #tpu.memory_space<vmem>>, %arg7: memref<1x10xf32, #tpu.memory_space<vmem>>, %arg8: memref<8x10xf32, #tpu.memory_space<vmem>>) attributes {dimension_semantics = [#tpu.dimension_semantics<parallel>], iteration_bounds = array<i64: 1>, scalar_prefetch = 0 : i64, scratch_operands = 0 : i64, tpu.core_type = #tpu.core_type<tc>, window_params = [{transform_indices = @transform_0, window_bounds = array<i64: 28, 8, 28>}, {pipeline_mode = #tpu.pipeline_mode<synchronous>, transform_indices = @transform_1, window_bounds = array<i64: 140, 96>}, {pipeline_mode = #tpu.pipeline_mode<synchronous>, transform_indices = @transform_2, window_bounds = array<i64: 1, 96>}, {pipeline_mode = #tpu.pipeline_mode<synchronous>, transform_indices = @transform_3, window_bounds = array<i64: 480, 96>}, {pipeline_mode = #tpu.pipeline_mode<synchronous>, transform_indices = @transform_4, window_bounds = array<i64: 1, 96>}, {pipeline_mode = #tpu.pipeline_mode<synchronous>, transform_indices = @transform_5, window_bounds = array<i64: 4, 96, 10>}, {pipeline_mode = #tpu.pipeline_mode<synchronous>, transform_indices = @transform_6, window_bounds = array<i64: 1, 10>}, {transform_indices = @transform_7, window_bounds = array<i64: 8, 10>}]} {
    %c0 = arith.constant 0 : index
    %c0_0 = arith.constant 0 : index
    %c0_1 = arith.constant 0 : index
    %0 = vector.load %arg1[%c0, %c0_0, %c0_1] : memref<28x8x28xf32, #tpu.memory_space<vmem>>, vector<24x8x28xf32>
    %c1 = arith.constant 1 : index
    %c0_2 = arith.constant 0 : index
    %c0_3 = arith.constant 0 : index
    %1 = vector.load %arg1[%c1, %c0_2, %c0_3] : memref<28x8x28xf32, #tpu.memory_space<vmem>>, vector<24x8x28xf32>
    %c2 = arith.constant 2 : index
    %c0_4 = arith.constant 0 : index
    %c0_5 = arith.constant 0 : index
    %2 = vector.load %arg1[%c2, %c0_4, %c0_5] : memref<28x8x28xf32, #tpu.memory_space<vmem>>, vector<24x8x28xf32>
    %c3 = arith.constant 3 : index
    %c0_6 = arith.constant 0 : index
    %c0_7 = arith.constant 0 : index
    %3 = vector.load %arg1[%c3, %c0_6, %c0_7] : memref<28x8x28xf32, #tpu.memory_space<vmem>>, vector<24x8x28xf32>
    %c4 = arith.constant 4 : index
    %c0_8 = arith.constant 0 : index
    %c0_9 = arith.constant 0 : index
    %4 = vector.load %arg1[%c4, %c0_8, %c0_9] : memref<28x8x28xf32, #tpu.memory_space<vmem>>, vector<24x8x28xf32>
    %5 = tpu.concatenate %0, %1, %2, %3, %4 in 2 : vector<24x8x28xf32>, vector<24x8x28xf32>, vector<24x8x28xf32>, vector<24x8x28xf32>, vector<24x8x28xf32> -> vector<24x8x140xf32>
    %6 = vector.shape_cast %5 : vector<24x8x140xf32> to vector<192x140xf32>
    %c0_10 = arith.constant 0 : index
    %c0_11 = arith.constant 0 : index
    %7 = vector.load %arg2[%c0_10, %c0_11] : memref<140x96xf32, #tpu.memory_space<vmem>>, vector<140x96xf32>
    %cst = arith.constant dense<0.000000e+00> : vector<192x96xf32>
    %8 = tpu.matmul %6, %7, %cst {dimension_numbers = #tpu.dot_dimension_numbers<[1], [0], [0], [1], [0, 0, 1, 1], [], []>} : vector<192x140xf32>, vector<140x96xf32>, vector<192x96xf32> -> vector<192x96xf32>
    %c0_12 = arith.constant 0 : index
    %c0_13 = arith.constant 0 : index
    %9 = vector.load %arg3[%c0_12, %c0_13] : memref<1x96xf32, #tpu.memory_space<vmem>>, vector<1x96xf32>
    %10 = vector.broadcast %9 : vector<1x96xf32> to vector<192x96xf32>
    %11 = arith.addf %8, %10 : vector<192x96xf32>
    %12 = arith.mulf %11, %11 : vector<192x96xf32>
    %13 = vector.shape_cast %12 : vector<192x96xf32> to vector<24x8x96xf32>
    %14 = vector.shape_cast %13 : vector<24x8x96xf32> to vector<12x2x8x96xf32>
    %cst_14 = arith.constant dense<0.000000e+00> : vector<12x8x96xf32>
    %15 = vector.multi_reduction <add>, %14, %cst_14 [1] : vector<12x2x8x96xf32> to vector<12x8x96xf32>
    %cst_15 = arith.constant 5.000000e-01 : f32
    %16 = vector.broadcast %cst_15 : f32 to vector<12x8x96xf32>
    %17 = arith.mulf %15, %16 : vector<12x8x96xf32>
    %18 = vector.extract_strided_slice %17 {offsets = [0, 0, 0], sizes = [8, 8, 96], strides = [1, 1, 1]} : vector<12x8x96xf32> to vector<8x8x96xf32>
    %19 = vector.extract_strided_slice %17 {offsets = [1, 0, 0], sizes = [8, 8, 96], strides = [1, 1, 1]} : vector<12x8x96xf32> to vector<8x8x96xf32>
    %20 = vector.extract_strided_slice %17 {offsets = [2, 0, 0], sizes = [8, 8, 96], strides = [1, 1, 1]} : vector<12x8x96xf32> to vector<8x8x96xf32>
    %21 = vector.extract_strided_slice %17 {offsets = [3, 0, 0], sizes = [8, 8, 96], strides = [1, 1, 1]} : vector<12x8x96xf32> to vector<8x8x96xf32>
    %22 = vector.extract_strided_slice %17 {offsets = [4, 0, 0], sizes = [8, 8, 96], strides = [1, 1, 1]} : vector<12x8x96xf32> to vector<8x8x96xf32>
    %23 = tpu.concatenate %18, %19, %20, %21, %22 in 2 : vector<8x8x96xf32>, vector<8x8x96xf32>, vector<8x8x96xf32>, vector<8x8x96xf32>, vector<8x8x96xf32> -> vector<8x8x480xf32>
    %24 = vector.shape_cast %23 : vector<8x8x480xf32> to vector<64x480xf32>
    %c0_16 = arith.constant 0 : index
    %c0_17 = arith.constant 0 : index
    %25 = vector.load %arg4[%c0_16, %c0_17] : memref<480x96xf32, #tpu.memory_space<vmem>>, vector<480x96xf32>
    %cst_18 = arith.constant dense<0.000000e+00> : vector<64x96xf32>
    %26 = tpu.matmul %24, %25, %cst_18 {dimension_numbers = #tpu.dot_dimension_numbers<[1], [0], [0], [1], [0, 0, 1, 1], [], []>} : vector<64x480xf32>, vector<480x96xf32>, vector<64x96xf32> -> vector<64x96xf32>
    %c0_19 = arith.constant 0 : index
    %c0_20 = arith.constant 0 : index
    %27 = vector.load %arg5[%c0_19, %c0_20] : memref<1x96xf32, #tpu.memory_space<vmem>>, vector<1x96xf32>
    %28 = vector.broadcast %27 : vector<1x96xf32> to vector<64x96xf32>
    %29 = arith.addf %26, %28 : vector<64x96xf32>
    %30 = arith.mulf %29, %29 : vector<64x96xf32>
    %31 = vector.shape_cast %30 : vector<64x96xf32> to vector<8x8x96xf32>
    %32 = vector.shape_cast %31 : vector<8x8x96xf32> to vector<4x2x8x96xf32>
    %cst_21 = arith.constant dense<0.000000e+00> : vector<4x8x96xf32>
    %33 = vector.multi_reduction <add>, %32, %cst_21 [1] : vector<4x2x8x96xf32> to vector<4x8x96xf32>
    %cst_22 = arith.constant 5.000000e-01 : f32
    %34 = vector.broadcast %cst_22 : f32 to vector<4x8x96xf32>
    %35 = arith.mulf %33, %34 : vector<4x8x96xf32>
    %c0_23 = arith.constant 0 : index
    %c0_24 = arith.constant 0 : index
    %36 = vector.load %arg7[%c0_23, %c0_24] : memref<1x10xf32, #tpu.memory_space<vmem>>, vector<1x10xf32>
    %37 = vector.extract_strided_slice %35 {offsets = [0, 0, 0], sizes = [1, 8, 96], strides = [1, 1, 1]} : vector<4x8x96xf32> to vector<1x8x96xf32>
    %38 = vector.shape_cast %37 : vector<1x8x96xf32> to vector<8x96xf32>
    %c0_25 = arith.constant 0 : index
    %c0_26 = arith.constant 0 : index
    %c0_27 = arith.constant 0 : index
    %39 = vector.load %arg6[%c0_25, %c0_26, %c0_27] : memref<4x96x10xf32, #tpu.memory_space<vmem>>, vector<1x96x10xf32>
    %40 = vector.shape_cast %39 : vector<1x96x10xf32> to vector<96x10xf32>
    %cst_28 = arith.constant dense<0.000000e+00> : vector<8x10xf32>
    %41 = tpu.matmul %38, %40, %cst_28 {dimension_numbers = #tpu.dot_dimension_numbers<[1], [0], [0], [1], [0, 0, 1, 1], [], []>} : vector<8x96xf32>, vector<96x10xf32>, vector<8x10xf32> -> vector<8x10xf32>
    %42 = vector.broadcast %36 : vector<1x10xf32> to vector<8x10xf32>
    %43 = arith.addf %42, %41 : vector<8x10xf32>
    %44 = vector.extract_strided_slice %35 {offsets = [1, 0, 0], sizes = [1, 8, 96], strides = [1, 1, 1]} : vector<4x8x96xf32> to vector<1x8x96xf32>
    %45 = vector.shape_cast %44 : vector<1x8x96xf32> to vector<8x96xf32>
    %c1_29 = arith.constant 1 : index
    %c0_30 = arith.constant 0 : index
    %c0_31 = arith.constant 0 : index
    %46 = vector.load %arg6[%c1_29, %c0_30, %c0_31] : memref<4x96x10xf32, #tpu.memory_space<vmem>>, vector<1x96x10xf32>
    %47 = vector.shape_cast %46 : vector<1x96x10xf32> to vector<96x10xf32>
    %cst_32 = arith.constant dense<0.000000e+00> : vector<8x10xf32>
    %48 = tpu.matmul %45, %47, %cst_32 {dimension_numbers = #tpu.dot_dimension_numbers<[1], [0], [0], [1], [0, 0, 1, 1], [], []>} : vector<8x96xf32>, vector<96x10xf32>, vector<8x10xf32> -> vector<8x10xf32>
    %49 = arith.addf %43, %48 : vector<8x10xf32>
    %50 = vector.extract_strided_slice %35 {offsets = [2, 0, 0], sizes = [1, 8, 96], strides = [1, 1, 1]} : vector<4x8x96xf32> to vector<1x8x96xf32>
    %51 = vector.shape_cast %50 : vector<1x8x96xf32> to vector<8x96xf32>
    %c2_33 = arith.constant 2 : index
    %c0_34 = arith.constant 0 : index
    %c0_35 = arith.constant 0 : index
    %52 = vector.load %arg6[%c2_33, %c0_34, %c0_35] : memref<4x96x10xf32, #tpu.memory_space<vmem>>, vector<1x96x10xf32>
    %53 = vector.shape_cast %52 : vector<1x96x10xf32> to vector<96x10xf32>
    %cst_36 = arith.constant dense<0.000000e+00> : vector<8x10xf32>
    %54 = tpu.matmul %51, %53, %cst_36 {dimension_numbers = #tpu.dot_dimension_numbers<[1], [0], [0], [1], [0, 0, 1, 1], [], []>} : vector<8x96xf32>, vector<96x10xf32>, vector<8x10xf32> -> vector<8x10xf32>
    %55 = arith.addf %49, %54 : vector<8x10xf32>
    %56 = vector.extract_strided_slice %35 {offsets = [3, 0, 0], sizes = [1, 8, 96], strides = [1, 1, 1]} : vector<4x8x96xf32> to vector<1x8x96xf32>
    %57 = vector.shape_cast %56 : vector<1x8x96xf32> to vector<8x96xf32>
    %c3_37 = arith.constant 3 : index
    %c0_38 = arith.constant 0 : index
    %c0_39 = arith.constant 0 : index
    %58 = vector.load %arg6[%c3_37, %c0_38, %c0_39] : memref<4x96x10xf32, #tpu.memory_space<vmem>>, vector<1x96x10xf32>
    %59 = vector.shape_cast %58 : vector<1x96x10xf32> to vector<96x10xf32>
    %cst_40 = arith.constant dense<0.000000e+00> : vector<8x10xf32>
    %60 = tpu.matmul %57, %59, %cst_40 {dimension_numbers = #tpu.dot_dimension_numbers<[1], [0], [0], [1], [0, 0, 1, 1], [], []>} : vector<8x96xf32>, vector<96x10xf32>, vector<8x10xf32> -> vector<8x10xf32>
    %61 = arith.addf %55, %60 : vector<8x10xf32>
    %c0_41 = arith.constant 0 : index
    %c0_42 = arith.constant 0 : index
    %62 = vector.load %arg8[%c0_41, %c0_42] : memref<8x10xf32, #tpu.memory_space<vmem>>, vector<8x10xf32>
    tpu.vector_store %arg8[%c0_41, %c0_42], %61 {strides = array<i32>} : memref<8x10xf32, #tpu.memory_space<vmem>>, vector<8x10xf32>,
    return
  }
  func.func @transform_0(%arg0: i32) -> (i32, i32, i32) {
    %c0_i32 = arith.constant 0 : i32
    %c0_i32_0 = arith.constant 0 : i32
    %c0_i32_1 = arith.constant 0 : i32
    return %c0_i32, %arg0, %c0_i32_0 : i32, i32, i32
  }
  func.func @transform_1(%arg0: i32) -> (i32, i32) {
    %c0_i32 = arith.constant 0 : i32
    %c0_i32_0 = arith.constant 0 : i32
    %c0_i32_1 = arith.constant 0 : i32
    return %c0_i32, %c0_i32_0 : i32, i32
  }
  func.func @transform_2(%arg0: i32) -> (i32, i32) {
    %c0_i32 = arith.constant 0 : i32
    %c0_i32_0 = arith.constant 0 : i32
    %c0_i32_1 = arith.constant 0 : i32
    return %c0_i32, %c0_i32_0 : i32, i32
  }
  func.func @transform_3(%arg0: i32) -> (i32, i32) {
    %c0_i32 = arith.constant 0 : i32
    %c0_i32_0 = arith.constant 0 : i32
    %c0_i32_1 = arith.constant 0 : i32
    return %c0_i32, %c0_i32_0 : i32, i32
  }
  func.func @transform_4(%arg0: i32) -> (i32, i32) {
    %c0_i32 = arith.constant 0 : i32
    %c0_i32_0 = arith.constant 0 : i32
    %c0_i32_1 = arith.constant 0 : i32
    return %c0_i32, %c0_i32_0 : i32, i32
  }
  func.func @transform_5(%arg0: i32) -> (i32, i32, i32) {
    %c0_i32 = arith.constant 0 : i32
    %c0_i32_0 = arith.constant 0 : i32
    %c0_i32_1 = arith.constant 0 : i32
    %c0_i32_2 = arith.constant 0 : i32
    return %c0_i32, %c0_i32_0, %c0_i32_1 : i32, i32, i32
  }
  func.func @transform_6(%arg0: i32) -> (i32, i32) {
    %c0_i32 = arith.constant 0 : i32
    %c0_i32_0 = arith.constant 0 : i32
    %c0_i32_1 = arith.constant 0 : i32
    return %c0_i32, %c0_i32_0 : i32, i32
  }
  func.func @transform_7(%arg0: i32) -> (i32, i32) {
    %c0_i32 = arith.constant 0 : i32
    %c0_i32_0 = arith.constant 0 : i32
    return %arg0, %c0_i32 : i32, i32
  }
}

</mosaic_0001>

<llo_original>
// kernel: m2_forward.1
$region0: #{m2_forward.1}
  #allocation0 [shape = 'u32[]', space=smem, size = 0x4, offset = 0x4, fixed_abs, tag = 'smem constant byte address 0x4 - core index']
  #allocation1 [shape = 'u32[144,128]{1,0:T(1,128)}', space=vmem, size = 0x12000, scoped, tag = 'internal scratch']
  %s0 = inlined_call_operand.vmem [shape: f32[28,8,28], index: 0, kind: input, shape index: {}]
  %s1 = inlined_call_operand.vmem [shape: f32[140,96], index: 1, kind: input, shape index: {}]
  %s2 = inlined_call_operand.vmem [shape: f32[1,96], index: 2, kind: input, shape index: {}]
  %s3 = inlined_call_operand.vmem [shape: f32[480,96], index: 3, kind: input, shape index: {}]
  %s4 = inlined_call_operand.vmem [shape: f32[1,96], index: 4, kind: input, shape index: {}]
  %s5 = inlined_call_operand.vmem [shape: f32[4,96,10], index: 5, kind: input, shape index: {}]
  %s6 = inlined_call_operand.vmem [shape: f32[1,10], index: 6, kind: input, shape index: {}]
  %s7 = inlined_call_operand.vmem [shape: f32[8,10], index: 7, kind: output, shape index: {}]
  %s8 = sld [smem:[#allocation0]]
  $region38: #{m2_forward.1} parent=0
    _
  %s10 = ssub.s32 1, %s8
  %s11 = scalar_select 0, %s10, %s8
  // Predicated region
  $region2: #{m2_forward.1} parent=0 // pred_check
    _
  $region3: #{m2_forward.1} parent=0 // pred_check_branch
    %13 = sbr.rel (0) target = $region5
  $region4: #{m2_forward.1} parent=0 // pred_region
    _
  $region5: #{m2_forward.1} parent=0 // pred_fallthru
    _
  // Predicated region
  $region6: #{m2_forward.1} parent=0 // pred_check
    _
  $region7: #{m2_forward.1} parent=0 // pred_check_branch
    %15 = sbr.rel (0) target = $region9
  $region8: #{m2_forward.1} parent=0 // pred_region
    _
  $region9: #{m2_forward.1} parent=0 // pred_fallthru
    _
  // Predicated region
  $region10: #{m2_forward.1} parent=0 // pred_check
    _
  $region11: #{m2_forward.1} parent=0 // pred_check_branch
    %17 = sbr.rel (0) target = $region13
  $region12: #{m2_forward.1} parent=0 // pred_region
    _
  $region13: #{m2_forward.1} parent=0 // pred_fallthru
    _
  // Predicated region
  $region14: #{m2_forward.1} parent=0 // pred_check
    _
  $region15: #{m2_forward.1} parent=0 // pred_check_branch
    %19 = sbr.rel (0) target = $region17
  $region16: #{m2_forward.1} parent=0 // pred_region
    _
  $region17: #{m2_forward.1} parent=0 // pred_fallthru
    _
  // Predicated region
  $region18: #{m2_forward.1} parent=0 // pred_check
    _
  $region19: #{m2_forward.1} parent=0 // pred_check_branch
    %21 = sbr.rel (0) target = $region21
  $region20: #{m2_forward.1} parent=0 // pred_region
    _
  $region21: #{m2_forward.1} parent=0 // pred_fallthru
    _
  // Predicated region
  $region22: #{m2_forward.1} parent=0 // pred_check
    _
  $region23: #{m2_forward.1} parent=0 // pred_check_branch
    %23 = sbr.rel (0) target = $region25
  $region24: #{m2_forward.1} parent=0 // pred_region
    _
  $region25: #{m2_forward.1} parent=0 // pred_fallthru
    _
  // Predicated region
  $region26: #{m2_forward.1} parent=0 // pred_check
    _
  $region27: #{m2_forward.1} parent=0 // pred_check_branch
    %25 = sbr.rel (0) target = $region29
  $region28: #{m2_forward.1} parent=0 // pred_region
    _
  $region29: #{m2_forward.1} parent=0 // pred_fallthru
    _
  %v26 = vld [vmem:[%s0] sm:$0xff]
  %v27 = vld [vmem:[%s0 + $0x8] sm:$0xff]
  %v28 = vld [vmem:[%s0 + $0x10] sm:$0xff]
  %v29 = vld [vmem:[%s0 + $0x18] sm:$0xff]
  %v30 = vld [vmem:[%s0 + $0x20] sm:$0xff]
  %v31 = vld [vmem:[%s0 + $0x28] sm:$0xff]
  %v32 = vld [vmem:[%s0 + $0x30] sm:$0xff]
  %v33 = vld [vmem:[%s0 + $0x38] sm:$0xff]
  %v34 = vld [vmem:[%s0 + $0x40] sm:$0xff]
  %v35 = vld [vmem:[%s0 + $0x48] sm:$0xff]
  %v36 = vld [vmem:[%s0 + $0x50] sm:$0xff]
  %v37 = vld [vmem:[%s0 + $0x58] sm:$0xff]
  %v38 = vld [vmem:[%s0 + $0x60] sm:$0xff]
  %v39 = vld [vmem:[%s0 + $0x68] sm:$0xff]
  %v40 = vld [vmem:[%s0 + $0x70] sm:$0xff]
  %v41 = vld [vmem:[%s0 + $0x78] sm:$0xff]
  %v42 = vld [vmem:[%s0 + $0x80] sm:$0xff]
  %v43 = vld [vmem:[%s0 + $0x88] sm:$0xff]
  %v44 = vld [vmem:[%s0 + $0x90] sm:$0xff]
  %v45 = vld [vmem:[%s0 + $0x98] sm:$0xff]
  %v46 = vld [vmem:[%s0 + $0xa0] sm:$0xff]
  %v47 = vld [vmem:[%s0 + $0xa8] sm:$0xff]
  %v48 = vld [vmem:[%s0 + $0xb0] sm:$0xff]
  %v49 = vld [vmem:[%s0 + $0xb8] sm:$0xff]
  %s50 = scalar_lea.vmem %s0, 8
  %v51 = vld [vmem:[%s50] sm:$0xff]
  %v52 = vld [vmem:[%s50 + $0x8] sm:$0xff]
  %v53 = vld [vmem:[%s50 + $0x10] sm:$0xff]
  %v54 = vld [vmem:[%s50 + $0x18] sm:$0xff]
  %v55 = vld [vmem:[%s50 + $0x20] sm:$0xff]
  %v56 = vld [vmem:[%s50 + $0x28] sm:$0xff]
  %v57 = vld [vmem:[%s50 + $0x30] sm:$0xff]
  %v58 = vld [vmem:[%s50 + $0x38] sm:$0xff]
  %v59 = vld [vmem:[%s50 + $0x40] sm:$0xff]
  %v60 = vld [vmem:[%s50 + $0x48] sm:$0xff]
  %v61 = vld [vmem:[%s50 + $0x50] sm:$0xff]
  %v62 = vld [vmem:[%s50 + $0x58] sm:$0xff]
  %v63 = vld [vmem:[%s50 + $0x60] sm:$0xff]
  %v64 = vld [vmem:[%s50 + $0x68] sm:$0xff]
  %v65 = vld [vmem:[%s50 + $0x70] sm:$0xff]
  %v66 = vld [vmem:[%s50 + $0x78] sm:$0xff]
  %v67 = vld [vmem:[%s50 + $0x80] sm:$0xff]
  %v68 = vld [vmem:[%s50 + $0x88] sm:$0xff]
  %v69 = vld [vmem:[%s50 + $0x90] sm:$0xff]
  %v70 = vld [vmem:[%s50 + $0x98] sm:$0xff]
  %v71 = vld [vmem:[%s50 + $0xa0] sm:$0xff]
  %v72 = vld [vmem:[%s50 + $0xa8] sm:$0xff]
  %v73 = vld [vmem:[%s50 + $0xb0] sm:$0xff]
  %v74 = vld [vmem:[%s50 + $0xb8] sm:$0xff]
  %s75 = scalar_lea.vmem %s0, 16
  %v76 = vld [vmem:[%s75] sm:$0xff]
  %v77 = vld [vmem:[%s75 + $0x8] sm:$0xff]
  %v78 = vld [vmem:[%s75 + $0x10] sm:$0xff]
  %v79 = vld [vmem:[%s75 + $0x18] sm:$0xff]
  %v80 = vld [vmem:[%s75 + $0x20] sm:$0xff]
  %v81 = vld [vmem:[%s75 + $0x28] sm:$0xff]
  %v82 = vld [vmem:[%s75 + $0x30] sm:$0xff]
  %v83 = vld [vmem:[%s75 + $0x38] sm:$0xff]
  %v84 = vld [vmem:[%s75 + $0x40] sm:$0xff]
  %v85 = vld [vmem:[%s75 + $0x48] sm:$0xff]
  %v86 = vld [vmem:[%s75 + $0x50] sm:$0xff]
  %v87 = vld [vmem:[%s75 + $0x58] sm:$0xff]
  %v88 = vld [vmem:[%s75 + $0x60] sm:$0xff]
  %v89 = vld [vmem:[%s75 + $0x68] sm:$0xff]
  %v90 = vld [vmem:[%s75 + $0x70] sm:$0xff]
  %v91 = vld [vmem:[%s75 + $0x78] sm:$0xff]
  %v92 = vld [vmem:[%s75 + $0x80] sm:$0xff]
  %v93 = vld [vmem:[%s75 + $0x88] sm:$0xff]
  %v94 = vld [vmem:[%s75 + $0x90] sm:$0xff]
  %v95 = vld [vmem:[%s75 + $0x98] sm:$0xff]
  %v96 = vld [vmem:[%s75 + $0xa0] sm:$0xff]
  %v97 = vld [vmem:[%s75 + $0xa8] sm:$0xff]
  %v98 = vld [vmem:[%s75 + $0xb0] sm:$0xff]
  %v99 = vld [vmem:[%s75 + $0xb8] sm:$0xff]
  %s100 = scalar_lea.vmem %s0, 24
  %v101 = vld [vmem:[%s100] sm:$0xff]
  %v102 = vld [vmem:[%s100 + $0x8] sm:$0xff]
  %v103 = vld [vmem:[%s100 + $0x10] sm:$0xff]
  %v104 = vld [vmem:[%s100 + $0x18] sm:$0xff]
  %v105 = vld [vmem:[%s100 + $0x20] sm:$0xff]
  %v106 = vld [vmem:[%s100 + $0x28] sm:$0xff]
  %v107 = vld [vmem:[%s100 + $0x30] sm:$0xff]
  %v108 = vld [vmem:[%s100 + $0x38] sm:$0xff]
  %v109 = vld [vmem:[%s100 + $0x40] sm:$0xff]
  %v110 = vld [vmem:[%s100 + $0x48] sm:$0xff]
  %v111 = vld [vmem:[%s100 + $0x50] sm:$0xff]
  %v112 = vld [vmem:[%s100 + $0x58] sm:$0xff]
  %v113 = vld [vmem:[%s100 + $0x60] sm:$0xff]
  %v114 = vld [vmem:[%s100 + $0x68] sm:$0xff]
  %v115 = vld [vmem:[%s100 + $0x70] sm:$0xff]
  %v116 = vld [vmem:[%s100 + $0x78] sm:$0xff]
  %v117 = vld [vmem:[%s100 + $0x80] sm:$0xff]
  %v118 = vld [vmem:[%s100 + $0x88] sm:$0xff]
  %v119 = vld [vmem:[%s100 + $0x90] sm:$0xff]
  %v120 = vld [vmem:[%s100 + $0x98] sm:$0xff]
  %v121 = vld [vmem:[%s100 + $0xa0] sm:$0xff]
  %v122 = vld [vmem:[%s100 + $0xa8] sm:$0xff]
  %v123 = vld [vmem:[%s100 + $0xb0] sm:$0xff]
  %v124 = vld [vmem:[%s100 + $0xb8] sm:$0xff]
  %s125 = scalar_lea.vmem %s0, 32
  %v126 = vld [vmem:[%s125] sm:$0xff]
  %v127 = vld [vmem:[%s125 + $0x8] sm:$0xff]
  %v128 = vld [vmem:[%s125 + $0x10] sm:$0xff]
  %v129 = vld [vmem:[%s125 + $0x18] sm:$0xff]
  %v130 = vld [vmem:[%s125 + $0x20] sm:$0xff]
  %v131 = vld [vmem:[%s125 + $0x28] sm:$0xff]
  %v132 = vld [vmem:[%s125 + $0x30] sm:$0xff]
  %v133 = vld [vmem:[%s125 + $0x38] sm:$0xff]
  %v134 = vld [vmem:[%s125 + $0x40] sm:$0xff]
  %v135 = vld [vmem:[%s125 + $0x48] sm:$0xff]
  %v136 = vld [vmem:[%s125 + $0x50] sm:$0xff]
  %v137 = vld [vmem:[%s125 + $0x58] sm:$0xff]
  %v138 = vld [vmem:[%s125 + $0x60] sm:$0xff]
  %v139 = vld [vmem:[%s125 + $0x68] sm:$0xff]
  %v140 = vld [vmem:[%s125 + $0x70] sm:$0xff]
  %v141 = vld [vmem:[%s125 + $0x78] sm:$0xff]
  %v142 = vld [vmem:[%s125 + $0x80] sm:$0xff]
  %v143 = vld [vmem:[%s125 + $0x88] sm:$0xff]
  %v144 = vld [vmem:[%s125 + $0x90] sm:$0xff]
  %v145 = vld [vmem:[%s125 + $0x98] sm:$0xff]
  %v146 = vld [vmem:[%s125 + $0xa0] sm:$0xff]
  %v147 = vld [vmem:[%s125 + $0xa8] sm:$0xff]
  %v148 = vld [vmem:[%s125 + $0xb0] sm:$0xff]
  %v149 = vld [vmem:[%s125 + $0xb8] sm:$0xff]
  %174 = vrot.lane.b32.xlu0 %v51, 28
  %v175 = vpop.permute.xlu0 %174
  %176 = vrot.lane.b32.xlu0 %v52, 28
  %v177 = vpop.permute.xlu0 %176
  %178 = vrot.lane.b32.xlu0 %v53, 28
  %v179 = vpop.permute.xlu0 %178
  %180 = vrot.lane.b32.xlu0 %v54, 28
  %v181 = vpop.permute.xlu0 %180
  %182 = vrot.lane.b32.xlu0 %v55, 28
  %v183 = vpop.permute.xlu0 %182
  %184 = vrot.lane.b32.xlu0 %v56, 28
  %v185 = vpop.permute.xlu0 %184
  %186 = vrot.lane.b32.xlu0 %v57, 28
  %v187 = vpop.permute.xlu0 %186
  %188 = vrot.lane.b32.xlu0 %v58, 28
  %v189 = vpop.permute.xlu0 %188
  %190 = vrot.lane.b32.xlu0 %v59, 28
  %v191 = vpop.permute.xlu0 %190
  %192 = vrot.lane.b32.xlu0 %v60, 28
  %v193 = vpop.permute.xlu0 %192
  %194 = vrot.lane.b32.xlu0 %v61, 28
  %v195 = vpop.permute.xlu0 %194
  %196 = vrot.lane.b32.xlu0 %v62, 28
  %v197 = vpop.permute.xlu0 %196
  %198 = vrot.lane.b32.xlu0 %v63, 28
  %v199 = vpop.permute.xlu0 %198
  %200 = vrot.lane.b32.xlu0 %v64, 28
  %v201 = vpop.permute.xlu0 %200
  %202 = vrot.lane.b32.xlu0 %v65, 28
  %v203 = vpop.permute.xlu0 %202
  %204 = vrot.lane.b32.xlu0 %v66, 28
  %v205 = vpop.permute.xlu0 %204
  %206 = vrot.lane.b32.xlu0 %v67, 28
  %v207 = vpop.permute.xlu0 %206
  %208 = vrot.lane.b32.xlu0 %v68, 28
  %v209 = vpop.permute.xlu0 %208
  %210 = vrot.lane.b32.xlu0 %v69, 28
  %v211 = vpop.permute.xlu0 %210
  %212 = vrot.lane.b32.xlu0 %v70, 28
  %v213 = vpop.permute.xlu0 %212
  %214 = vrot.lane.b32.xlu0 %v71, 28
  %v215 = vpop.permute.xlu0 %214
  %216 = vrot.lane.b32.xlu0 %v72, 28
  %v217 = vpop.permute.xlu0 %216
  %218 = vrot.lane.b32.xlu0 %v73, 28
  %v219 = vpop.permute.xlu0 %218
  %220 = vrot.lane.b32.xlu0 %v74, 28
  %v221 = vpop.permute.xlu0 %220
  %270 = vrot.lane.b32.xlu0 %v76, 56
  %v271 = vpop.permute.xlu0 %270
  %272 = vrot.lane.b32.xlu0 %v77, 56
  %v273 = vpop.permute.xlu0 %272
  %274 = vrot.lane.b32.xlu0 %v78, 56
  %v275 = vpop.permute.xlu0 %274
  %276 = vrot.lane.b32.xlu0 %v79, 56
  %v277 = vpop.permute.xlu0 %276
  %278 = vrot.lane.b32.xlu0 %v80, 56
  %v279 = vpop.permute.xlu0 %278
  %280 = vrot.lane.b32.xlu0 %v81, 56
  %v281 = vpop.permute.xlu0 %280
  %282 = vrot.lane.b32.xlu0 %v82, 56
  %v283 = vpop.permute.xlu0 %282
  %284 = vrot.lane.b32.xlu0 %v83, 56
  %v285 = vpop.permute.xlu0 %284
  %286 = vrot.lane.b32.xlu0 %v84, 56
  %v287 = vpop.permute.xlu0 %286
  %288 = vrot.lane.b32.xlu0 %v85, 56
  %v289 = vpop.permute.xlu0 %288
  %290 = vrot.lane.b32.xlu0 %v86, 56
  %v291 = vpop.permute.xlu0 %290
  %292 = vrot.lane.b32.xlu0 %v87, 56
  %v293 = vpop.permute.xlu0 %292
  %294 = vrot.lane.b32.xlu0 %v88, 56
  %v295 = vpop.permute.xlu0 %294
  %296 = vrot.lane.b32.xlu0 %v89, 56
  %v297 = vpop.permute.xlu0 %296
  %298 = vrot.lane.b32.xlu0 %v90, 56
  %v299 = vpop.permute.xlu0 %298
  %300 = vrot.lane.b32.xlu0 %v91, 56
  %v301 = vpop.permute.xlu0 %300
  %302 = vrot.lane.b32.xlu0 %v92, 56
  %v303 = vpop.permute.xlu0 %302
  %304 = vrot.lane.b32.xlu0 %v93, 56
  %v305 = vpop.permute.xlu0 %304
  %306 = vrot.lane.b32.xlu0 %v94, 56
  %v307 = vpop.permute.xlu0 %306
  %308 = vrot.lane.b32.xlu0 %v95, 56
  %v309 = vpop.permute.xlu0 %308
  %310 = vrot.lane.b32.xlu0 %v96, 56
  %v311 = vpop.permute.xlu0 %310
  %312 = vrot.lane.b32.xlu0 %v97, 56
  %v313 = vpop.permute.xlu0 %312
  %314 = vrot.lane.b32.xlu0 %v98, 56
  %v315 = vpop.permute.xlu0 %314
  %316 = vrot.lane.b32.xlu0 %v99, 56
  %v317 = vpop.permute.xlu0 %316
  %366 = vrot.lane.b32.xlu0 %v101, 84
  %v367 = vpop.permute.xlu0 %366
  %368 = vrot.lane.b32.xlu0 %v102, 84
  %v369 = vpop.permute.xlu0 %368
  %370 = vrot.lane.b32.xlu0 %v103, 84
  %v371 = vpop.permute.xlu0 %370
  %372 = vrot.lane.b32.xlu0 %v104, 84
  %v373 = vpop.permute.xlu0 %372
  %374 = vrot.lane.b32.xlu0 %v105, 84
  %v375 = vpop.permute.xlu0 %374
  %376 = vrot.lane.b32.xlu0 %v106, 84
  %v377 = vpop.permute.xlu0 %376
  %378 = vrot.lane.b32.xlu0 %v107, 84
  %v379 = vpop.permute.xlu0 %378
  %380 = vrot.lane.b32.xlu0 %v108, 84
  %v381 = vpop.permute.xlu0 %380
  %382 = vrot.lane.b32.xlu0 %v109, 84
  %v383 = vpop.permute.xlu0 %382
  %384 = vrot.lane.b32.xlu0 %v110, 84
  %v385 = vpop.permute.xlu0 %384
  %386 = vrot.lane.b32.xlu0 %v111, 84
  %v387 = vpop.permute.xlu0 %386
  %388 = vrot.lane.b32.xlu0 %v112, 84
  %v389 = vpop.permute.xlu0 %388
  %390 = vrot.lane.b32.xlu0 %v113, 84
  %v391 = vpop.permute.xlu0 %390
  %392 = vrot.lane.b32.xlu0 %v114, 84
  %v393 = vpop.permute.xlu0 %392
  %394 = vrot.lane.b32.xlu0 %v115, 84
  %v395 = vpop.permute.xlu0 %394
  %396 = vrot.lane.b32.xlu0 %v116, 84
  %v397 = vpop.permute.xlu0 %396
  %398 = vrot.lane.b32.xlu0 %v117, 84
  %v399 = vpop.permute.xlu0 %398
  %400 = vrot.lane.b32.xlu0 %v118, 84
  %v401 = vpop.permute.xlu0 %400
  %402 = vrot.lane.b32.xlu0 %v119, 84
  %v403 = vpop.permute.xlu0 %402
  %404 = vrot.lane.b32.xlu0 %v120, 84
  %v405 = vpop.permute.xlu0 %404
  %406 = vrot.lane.b32.xlu0 %v121, 84
  %v407 = vpop.permute.xlu0 %406
  %408 = vrot.lane.b32.xlu0 %v122, 84
  %v409 = vpop.permute.xlu0 %408
  %410 = vrot.lane.b32.xlu0 %v123, 84
  %v411 = vpop.permute.xlu0 %410
  %412 = vrot.lane.b32.xlu0 %v124, 84
  %v413 = vpop.permute.xlu0 %412
  %462 = vrot.lane.b32.xlu0 %v126, 112
  %v463 = vpop.permute.xlu0 %462
  %464 = vrot.lane.b32.xlu0 %v127, 112
  %v465 = vpop.permute.xlu0 %464
  %466 = vrot.lane.b32.xlu0 %v128, 112
  %v467 = vpop.permute.xlu0 %466
  %468 = vrot.lane.b32.xlu0 %v129, 112
  %v469 = vpop.permute.xlu0 %468
  %470 = vrot.lane.b32.xlu0 %v130, 112
  %v471 = vpop.permute.xlu0 %470
  %472 = vrot.lane.b32.xlu0 %v131, 112
  %v473 = vpop.permute.xlu0 %472
  %474 = vrot.lane.b32.xlu0 %v132, 112
  %v475 = vpop.permute.xlu0 %474
  %476 = vrot.lane.b32.xlu0 %v133, 112
  %v477 = vpop.permute.xlu0 %476
  %478 = vrot.lane.b32.xlu0 %v134, 112
  %v479 = vpop.permute.xlu0 %478
  %480 = vrot.lane.b32.xlu0 %v135, 112
  %v481 = vpop.permute.xlu0 %480
  %482 = vrot.lane.b32.xlu0 %v136, 112
  %v483 = vpop.permute.xlu0 %482
  %484 = vrot.lane.b32.xlu0 %v137, 112
  %v485 = vpop.permute.xlu0 %484
  %486 = vrot.lane.b32.xlu0 %v138, 112
  %v487 = vpop.permute.xlu0 %486
  %488 = vrot.lane.b32.xlu0 %v139, 112
  %v489 = vpop.permute.xlu0 %488
  %490 = vrot.lane.b32.xlu0 %v140, 112
  %v491 = vpop.permute.xlu0 %490
  %492 = vrot.lane.b32.xlu0 %v141, 112
  %v493 = vpop.permute.xlu0 %492
  %494 = vrot.lane.b32.xlu0 %v142, 112
  %v495 = vpop.permute.xlu0 %494
  %496 = vrot.lane.b32.xlu0 %v143, 112
  %v497 = vpop.permute.xlu0 %496
  %498 = vrot.lane.b32.xlu0 %v144, 112
  %v499 = vpop.permute.xlu0 %498
  %500 = vrot.lane.b32.xlu0 %v145, 112
  %v501 = vpop.permute.xlu0 %500
  %502 = vrot.lane.b32.xlu0 %v146, 112
  %v503 = vpop.permute.xlu0 %502
  %504 = vrot.lane.b32.xlu0 %v147, 112
  %v505 = vpop.permute.xlu0 %504
  %506 = vrot.lane.b32.xlu0 %v148, 112
  %v507 = vpop.permute.xlu0 %506
  %508 = vrot.lane.b32.xlu0 %v149, 112
  %v509 = vpop.permute.xlu0 %508
  %vm534 = vcmask 228352
  %v535 = vsel %vm534, %v26, %v175
  %v536 = vsel %vm534, %v27, %v177
  %v537 = vsel %vm534, %v28, %v179
  %v538 = vsel %vm534, %v29, %v181
  %v539 = vsel %vm534, %v30, %v183
  %v540 = vsel %vm534, %v31, %v185
  %v541 = vsel %vm534, %v32, %v187
  %v542 = vsel %vm534, %v33, %v189
  %v543 = vsel %vm534, %v34, %v191
  %v544 = vsel %vm534, %v35, %v193
  %v545 = vsel %vm534, %v36, %v195
  %v546 = vsel %vm534, %v37, %v197
  %v547 = vsel %vm534, %v38, %v199
  %v548 = vsel %vm534, %v39, %v201
  %v549 = vsel %vm534, %v40, %v203
  %v550 = vsel %vm534, %v41, %v205
  %v551 = vsel %vm534, %v42, %v207
  %v552 = vsel %vm534, %v43, %v209
  %v553 = vsel %vm534, %v44, %v211
  %v554 = vsel %vm534, %v45, %v213
  %v555 = vsel %vm534, %v46, %v215
  %v556 = vsel %vm534, %v47, %v217
  %v557 = vsel %vm534, %v48, %v219
  %v558 = vsel %vm534, %v49, %v221
  %vm559 = vcmask 457728
  %v560 = vsel %vm559, %v535, %v271
  %v561 = vsel %vm559, %v536, %v273
  %v562 = vsel %vm559, %v537, %v275
  %v563 = vsel %vm559, %v538, %v277
  %v564 = vsel %vm559, %v539, %v279
  %v565 = vsel %vm559, %v540, %v281
  %v566 = vsel %vm559, %v541, %v283
  %v567 = vsel %vm559, %v542, %v285
  %v568 = vsel %vm559, %v543, %v287
  %v569 = vsel %vm559, %v544, %v289
  %v570 = vsel %vm559, %v545, %v291
  %v571 = vsel %vm559, %v546, %v293
  %v572 = vsel %vm559, %v547, %v295
  %v573 = vsel %vm559, %v548, %v297
  %v574 = vsel %vm559, %v549, %v299
  %v575 = vsel %vm559, %v550, %v301
  %v576 = vsel %vm559, %v551, %v303
  %v577 = vsel %vm559, %v552, %v305
  %v578 = vsel %vm559, %v553, %v307
  %v579 = vsel %vm559, %v554, %v309
  %v580 = vsel %vm559, %v555, %v311
  %v581 = vsel %vm559, %v556, %v313
  %v582 = vsel %vm559, %v557, %v315
  %v583 = vsel %vm559, %v558, %v317
  %vm584 = vcmask 687104
  %v585 = vsel %vm584, %v560, %v367
  %v586 = vsel %vm584, %v561, %v369
  %v587 = vsel %vm584, %v562, %v371
  %v588 = vsel %vm584, %v563, %v373
  %v589 = vsel %vm584, %v564, %v375
  %v590 = vsel %vm584, %v565, %v377
  %v591 = vsel %vm584, %v566, %v379
  %v592 = vsel %vm584, %v567, %v381
  %v593 = vsel %vm584, %v568, %v383
  %v594 = vsel %vm584, %v569, %v385
  %v595 = vsel %vm584, %v570, %v387
  %v596 = vsel %vm584, %v571, %v389
  %v597 = vsel %vm584, %v572, %v391
  %v598 = vsel %vm584, %v573, %v393
  %v599 = vsel %vm584, %v574, %v395
  %v600 = vsel %vm584, %v575, %v397
  %v601 = vsel %vm584, %v576, %v399
  %v602 = vsel %vm584, %v577, %v401
  %v603 = vsel %vm584, %v578, %v403
  %v604 = vsel %vm584, %v579, %v405
  %v605 = vsel %vm584, %v580, %v407
  %v606 = vsel %vm584, %v581, %v409
  %v607 = vsel %vm584, %v582, %v411
  %v608 = vsel %vm584, %v583, %v413
  %vm609 = vcmask 916480
  %v610 = vsel %vm609, %v585, %v463
  %v611 = vsel %vm609, %v586, %v465
  %v612 = vsel %vm609, %v587, %v467
  %v613 = vsel %vm609, %v588, %v469
  %v614 = vsel %vm609, %v589, %v471
  %v615 = vsel %vm609, %v590, %v473
  %v616 = vsel %vm609, %v591, %v475
  %v617 = vsel %vm609, %v592, %v477
  %v618 = vsel %vm609, %v593, %v479
  %v619 = vsel %vm609, %v594, %v481
  %v620 = vsel %vm609, %v595, %v483
  %v621 = vsel %vm609, %v596, %v485
  %v622 = vsel %vm609, %v597, %v487
  %v623 = vsel %vm609, %v598, %v489
  %v624 = vsel %vm609, %v599, %v491
  %v625 = vsel %vm609, %v600, %v493
  %v626 = vsel %vm609, %v601, %v495
  %v627 = vsel %vm609, %v602, %v497
  %v628 = vsel %vm609, %v603, %v499
  %v629 = vsel %vm609, %v604, %v501
  %v630 = vsel %vm609, %v605, %v503
  %v631 = vsel %vm609, %v606, %v505
  %v632 = vsel %vm609, %v607, %v507
  %v633 = vsel %vm609, %v608, %v509
  %v634 = vld [vmem:[%s1] sm:$0xff]
  %v635 = vld [vmem:[%s1 + $0x8] sm:$0xff]
  %v636 = vld [vmem:[%s1 + $0x10] sm:$0xff]
  %v637 = vld [vmem:[%s1 + $0x18] sm:$0xff]
  %v638 = vld [vmem:[%s1 + $0x20] sm:$0xff]
  %v639 = vld [vmem:[%s1 + $0x28] sm:$0xff]
  %v640 = vld [vmem:[%s1 + $0x30] sm:$0xff]
  %v641 = vld [vmem:[%s1 + $0x38] sm:$0xff]
  %v642 = vld [vmem:[%s1 + $0x40] sm:$0xff]
  %v643 = vld [vmem:[%s1 + $0x48] sm:$0xff]
  %v644 = vld [vmem:[%s1 + $0x50] sm:$0xff]
  %v645 = vld [vmem:[%s1 + $0x58] sm:$0xff]
  %v646 = vld [vmem:[%s1 + $0x60] sm:$0xff]
  %v647 = vld [vmem:[%s1 + $0x68] sm:$0xff]
  %v648 = vld [vmem:[%s1 + $0x70] sm:$0xff]
  %v649 = vld [vmem:[%s1 + $0x78] sm:$0xff]
  %v650 = vld [vmem:[%s1 + $0x80] sm:$0xff]
  %v651 = vld [vmem:[%s1 + $0x88] sm:$0xf]
  %v652 = vld [vmem:[%s2] sm:$0x1]
  %v654 = vlaneseq
  %v655 = vshrl.u32 %v654, 7
  %v656 = vsub.s32 0, %v655
  %v657 = vrot.slane %v652, %v656
  %vm659 = vcmask 97280
  %v660 = vsel %vm659, %v463, 0
  %v662 = vsel %vm659, %v465, 0
  %v664 = vsel %vm659, %v467, 0
  %v666 = vsel %vm659, %v469, 0
  %v668 = vsel %vm659, %v471, 0
  %v670 = vsel %vm659, %v473, 0
  %v672 = vsel %vm659, %v475, 0
  %v674 = vsel %vm659, %v477, 0
  %v676 = vsel %vm659, %v479, 0
  %v678 = vsel %vm659, %v481, 0
  %v680 = vsel %vm659, %v483, 0
  %v682 = vsel %vm659, %v485, 0
  %v684 = vsel %vm659, %v487, 0
  %v686 = vsel %vm659, %v489, 0
  %v688 = vsel %vm659, %v491, 0
  %v690 = vsel %vm659, %v493, 0
  %v692 = vsel %vm659, %v495, 0
  %v694 = vsel %vm659, %v497, 0
  %v696 = vsel %vm659, %v499, 0
  %v698 = vsel %vm659, %v501, 0
  %v700 = vsel %vm659, %v503, 0
  %v702 = vsel %vm659, %v505, 0
  %v704 = vsel %vm659, %v507, 0
  %v706 = vsel %vm659, %v509, 0
  %vm708 = vcmask 1043456
  %v710 = vsel %vm708, %v651, 0
  %712 = vmatprep.subr.mxu0 0.0
  %713 = vmatpush1.msra.mxu0 %v649
  %714 = vmatprep.subr.mxu0 0.0
  %715 = vmatpush1.msra.mxu0 %v648
  %716 = vmatprep.subr.mxu0 0.0
  %717 = vmatpush1.msra.mxu0 %v647
  %718 = vmatprep.subr.mxu0 0.0
  %719 = vmatpush1.msra.mxu0 %v646
  %720 = vmatprep.subr.mxu0 0.0
  %721 = vmatpush1.msra.mxu0 %v645
  %722 = vmatprep.subr.mxu0 0.0
  %723 = vmatpush1.msra.mxu0 %v644
  %724 = vmatprep.subr.mxu0 0.0
  %725 = vmatpush1.msra.mxu0 %v643
  %726 = vmatprep.subr.mxu0 0.0
  %727 = vmatpush1.msra.mxu0 %v642
  %728 = vmatprep.subr.mxu0 0.0
  %729 = vmatpush1.msra.mxu0 %v641
  %730 = vmatprep.subr.mxu0 0.0
  %731 = vmatpush1.msra.mxu0 %v640
  %732 = vmatprep.subr.mxu0 0.0
  %733 = vmatpush1.msra.mxu0 %v639
  %734 = vmatprep.subr.mxu0 0.0
  %735 = vmatpush1.msra.mxu0 %v638
  %736 = vmatprep.subr.mxu0 0.0
  %737 = vmatpush1.msra.mxu0 %v637
  %738 = vmatprep.subr.mxu0 0.0
  %739 = vmatpush1.msra.mxu0 %v636
  %740 = vmatprep.subr.mxu0 0.0
  %741 = vmatpush1.msra.mxu0 %v635
  %742 = vmatprep.subr.mxu0 0.0
  %743 = vmatpush1.msra.mxu0 %v634
  %744 = vmatprep.subr.mxu0 0.0
  %745 = vmatpush2.msra.mxu0 0.0
  %746 = vmatprep.subr.mxu0 0.0
  %747 = vmatpush2.msra.mxu0 0.0
  %748 = vmatprep.subr.mxu0 0.0
  %749 = vmatpush2.msra.mxu0 0.0
  %750 = vmatprep.subr.mxu0 0.0
  %751 = vmatpush2.msra.mxu0 0.0
  %752 = vmatprep.subr.mxu0 0.0
  %753 = vmatpush2.msra.mxu0 0.0
  %754 = vmatprep.subr.mxu0 0.0
  %755 = vmatpush2.msra.mxu0 0.0
  %756 = vmatprep.subr.mxu0 0.0
  %757 = vmatpush2.msra.mxu0 0.0
  %758 = vmatprep.subr.mxu0 0.0
  %759 = vmatpush2.msra.mxu0 0.0
  %760 = vmatprep.subr.mxu0 0.0
  %761 = vmatpush2.msra.mxu0 0.0
  %762 = vmatprep.subr.mxu0 0.0
  %763 = vmatpush2.msra.mxu0 0.0
  %764 = vmatprep.subr.mxu0 0.0
  %765 = vmatpush2.msra.mxu0 0.0
  %766 = vmatprep.subr.mxu0 0.0
  %767 = vmatpush2.msra.mxu0 0.0
  %768 = vmatprep.subr.mxu0 0.0
  %769 = vmatpush2.msra.mxu0 0.0
  %770 = vmatprep.subr.mxu0 0.0
  %771 = vmatpush2.msra.mxu0 0.0
  %772 = vmatprep.subr.mxu0 0.0
  %773 = vmatpush2.msra.mxu0 %v710
  %774 = vmatprep.subr.mxu0 0.0
  %775 = vmatpush2.msra.mxu0 %v650
  %776 = vmatprep.mubr.f32.mxu0 %v660
  %777 = vmatmul.mubr.f32.gmra.mxu0 %v610
  %v778 = vpop.f32.mrf.mxu0
  %v779 = vadd.f32 %v657, %v778
  %v780 = vpop.f32.mrf.mxu0
  %781 = vmatprep.mubr.f32.mxu0 %v662
  %782 = vmatmul.mubr.f32.gmra.mxu0 %v611
  %v783 = vpop.f32.mrf.mxu0
  %v784 = vadd.f32 %v657, %v783
  %v785 = vpop.f32.mrf.mxu0
  %786 = vmatprep.mubr.f32.mxu0 %v664
  %787 = vmatmul.mubr.f32.gmra.mxu0 %v612
  %v788 = vpop.f32.mrf.mxu0
  %v789 = vadd.f32 %v657, %v788
  %v790 = vpop.f32.mrf.mxu0
  %791 = vmatprep.mubr.f32.mxu0 %v666
  %792 = vmatmul.mubr.f32.gmra.mxu0 %v613
  %v793 = vpop.f32.mrf.mxu0
  %v794 = vadd.f32 %v657, %v793
  %v795 = vpop.f32.mrf.mxu0
  %796 = vmatprep.mubr.f32.mxu0 %v668
  %797 = vmatmul.mubr.f32.gmra.mxu0 %v614
  %v798 = vpop.f32.mrf.mxu0
  %v799 = vadd.f32 %v657, %v798
  %v800 = vpop.f32.mrf.mxu0
  %801 = vmatprep.mubr.f32.mxu0 %v670
  %802 = vmatmul.mubr.f32.gmra.mxu0 %v615
  %v803 = vpop.f32.mrf.mxu0
  %v804 = vadd.f32 %v657, %v803
  %v805 = vpop.f32.mrf.mxu0
  %806 = vmatprep.mubr.f32.mxu0 %v672
  %807 = vmatmul.mubr.f32.gmra.mxu0 %v616
  %v808 = vpop.f32.mrf.mxu0
  %v809 = vadd.f32 %v657, %v808
  %v810 = vpop.f32.mrf.mxu0
  %811 = vmatprep.mubr.f32.mxu0 %v674
  %812 = vmatmul.mubr.f32.gmra.mxu0 %v617
  %v813 = vpop.f32.mrf.mxu0
  %v814 = vadd.f32 %v657, %v813
  %v815 = vpop.f32.mrf.mxu0
  %816 = vmatprep.mubr.f32.mxu0 %v676
  %817 = vmatmul.mubr.f32.gmra.mxu0 %v618
  %v818 = vpop.f32.mrf.mxu0
  %v819 = vadd.f32 %v657, %v818
  %v820 = vpop.f32.mrf.mxu0
  %821 = vmatprep.mubr.f32.mxu0 %v678
  %822 = vmatmul.mubr.f32.gmra.mxu0 %v619
  %v823 = vpop.f32.mrf.mxu0
  %v824 = vadd.f32 %v657, %v823
  %v825 = vpop.f32.mrf.mxu0
  %826 = vmatprep.mubr.f32.mxu0 %v680
  %827 = vmatmul.mubr.f32.gmra.mxu0 %v620
  %v828 = vpop.f32.mrf.mxu0
  %v829 = vadd.f32 %v657, %v828
  %v830 = vpop.f32.mrf.mxu0
  %831 = vmatprep.mubr.f32.mxu0 %v682
  %832 = vmatmul.mubr.f32.gmra.mxu0 %v621
  %v833 = vpop.f32.mrf.mxu0
  %v834 = vadd.f32 %v657, %v833
  %v835 = vpop.f32.mrf.mxu0
  %836 = vmatprep.mubr.f32.mxu0 %v684
  %837 = vmatmul.mubr.f32.gmra.mxu0 %v622
  %v838 = vpop.f32.mrf.mxu0
  %v839 = vadd.f32 %v657, %v838
  %v840 = vpop.f32.mrf.mxu0
  %841 = vmatprep.mubr.f32.mxu0 %v686
  %842 = vmatmul.mubr.f32.gmra.mxu0 %v623
  %v843 = vpop.f32.mrf.mxu0
  %v844 = vadd.f32 %v657, %v843
  %v845 = vpop.f32.mrf.mxu0
  %846 = vmatprep.mubr.f32.mxu0 %v688
  %847 = vmatmul.mubr.f32.gmra.mxu0 %v624
  %v848 = vpop.f32.mrf.mxu0
  %v849 = vadd.f32 %v657, %v848
  %v850 = vpop.f32.mrf.mxu0
  %851 = vmatprep.mubr.f32.mxu0 %v690
  %852 = vmatmul.mubr.f32.gmra.mxu0 %v625
  %v853 = vpop.f32.mrf.mxu0
  %v854 = vadd.f32 %v657, %v853
  %v855 = vpop.f32.mrf.mxu0
  %856 = vmatprep.mubr.f32.mxu0 %v692
  %857 = vmatmul.mubr.f32.gmra.mxu0 %v626
  %v858 = vpop.f32.mrf.mxu0
  %v859 = vadd.f32 %v657, %v858
  %v860 = vpop.f32.mrf.mxu0
  %861 = vmatprep.mubr.f32.mxu0 %v694
  %862 = vmatmul.mubr.f32.gmra.mxu0 %v627
  %v863 = vpop.f32.mrf.mxu0
  %v864 = vadd.f32 %v657, %v863
  %v865 = vpop.f32.mrf.mxu0
  %866 = vmatprep.mubr.f32.mxu0 %v696
  %867 = vmatmul.mubr.f32.gmra.mxu0 %v628
  %v868 = vpop.f32.mrf.mxu0
  %v869 = vadd.f32 %v657, %v868
  %v870 = vpop.f32.mrf.mxu0
  %871 = vmatprep.mubr.f32.mxu0 %v698
  %872 = vmatmul.mubr.f32.gmra.mxu0 %v629
  %v873 = vpop.f32.mrf.mxu0
  %v874 = vadd.f32 %v657, %v873
  %v875 = vpop.f32.mrf.mxu0
  %876 = vmatprep.mubr.f32.mxu0 %v700
  %877 = vmatmul.mubr.f32.gmra.mxu0 %v630
  %v878 = vpop.f32.mrf.mxu0
  %v879 = vadd.f32 %v657, %v878
  %v880 = vpop.f32.mrf.mxu0
  %881 = vmatprep.mubr.f32.mxu0 %v702
  %882 = vmatmul.mubr.f32.gmra.mxu0 %v631
  %v883 = vpop.f32.mrf.mxu0
  %v884 = vadd.f32 %v657, %v883
  %v885 = vpop.f32.mrf.mxu0
  %886 = vmatprep.mubr.f32.mxu0 %v704
  %887 = vmatmul.mubr.f32.gmra.mxu0 %v632
  %v888 = vpop.f32.mrf.mxu0
  %v889 = vadd.f32 %v657, %v888
  %v890 = vpop.f32.mrf.mxu0
  %891 = vmatprep.mubr.f32.mxu0 %v706
  %892 = vmatmul.mubr.f32.gmra.mxu0 %v633
  %v893 = vpop.f32.mrf.mxu0
  %v894 = vadd.f32 %v657, %v893
  %v895 = vpop.f32.mrf.mxu0
  %896 = vdwg.mxu0
  %v897 = vmul.f32 %v779, %v779
  %v898 = vmul.f32 %v784, %v784
  %v899 = vmul.f32 %v789, %v789
  %v900 = vmul.f32 %v794, %v794
  %v901 = vmul.f32 %v799, %v799
  %v902 = vmul.f32 %v804, %v804
  %v903 = vmul.f32 %v809, %v809
  %v904 = vmul.f32 %v814, %v814
  %v905 = vmul.f32 %v819, %v819
  %v906 = vmul.f32 %v824, %v824
  %v907 = vmul.f32 %v829, %v829
  %v908 = vmul.f32 %v834, %v834
  %v909 = vmul.f32 %v839, %v839
  %v910 = vmul.f32 %v844, %v844
  %v911 = vmul.f32 %v849, %v849
  %v912 = vmul.f32 %v854, %v854
  %v913 = vmul.f32 %v859, %v859
  %v914 = vmul.f32 %v864, %v864
  %v915 = vmul.f32 %v869, %v869
  %v916 = vmul.f32 %v874, %v874
  %v917 = vmul.f32 %v879, %v879
  %v918 = vmul.f32 %v884, %v884
  %v919 = vmul.f32 %v889, %v889
  %v920 = vmul.f32 %v894, %v894
  %vm921 = vcmask 785408
  %v922 = vsel %vm921, %v897, 0.0
  %v923 = vsel %vm921, %v898, 0.0
  %v924 = vadd.f32 %v922, %v923
  %v925 = vsel %vm921, %v899, 0.0
  %v926 = vsel %vm921, %v900, 0.0
  %v927 = vadd.f32 %v925, %v926
  %v928 = vsel %vm921, %v901, 0.0
  %v929 = vsel %vm921, %v902, 0.0
  %v930 = vadd.f32 %v928, %v929
  %v931 = vsel %vm921, %v903, 0.0
  %v932 = vsel %vm921, %v904, 0.0
  %v933 = vadd.f32 %v931, %v932
  %v934 = vsel %vm921, %v905, 0.0
  %v935 = vsel %vm921, %v906, 0.0
  %v936 = vadd.f32 %v934, %v935
  %v937 = vsel %vm921, %v907, 0.0
  %v938 = vsel %vm921, %v908, 0.0
  %v939 = vadd.f32 %v937, %v938
  %v940 = vsel %vm921, %v909, 0.0
  %v941 = vsel %vm921, %v910, 0.0
  %v942 = vadd.f32 %v940, %v941
  %v943 = vsel %vm921, %v911, 0.0
  %v944 = vsel %vm921, %v912, 0.0
  %v945 = vadd.f32 %v943, %v944
  %v946 = vsel %vm921, %v913, 0.0
  %v947 = vsel %vm921, %v914, 0.0
  %v948 = vadd.f32 %v946, %v947
  %v949 = vsel %vm921, %v915, 0.0
  %v950 = vsel %vm921, %v916, 0.0
  %v951 = vadd.f32 %v949, %v950
  %v952 = vsel %vm921, %v917, 0.0
  %v953 = vsel %vm921, %v918, 0.0
  %v954 = vadd.f32 %v952, %v953
  %v955 = vsel %vm921, %v919, 0.0
  %v956 = vsel %vm921, %v920, 0.0
  %v957 = vadd.f32 %v955, %v956
  %v958 = vmul.f32 %v924, 0.5
  %v959 = vmul.f32 %v927, 0.5
  %v960 = vmul.f32 %v930, 0.5
  %v961 = vmul.f32 %v933, 0.5
  %v962 = vmul.f32 %v936, 0.5
  %v963 = vmul.f32 %v939, 0.5
  %v964 = vmul.f32 %v942, 0.5
  %v965 = vmul.f32 %v945, 0.5
  %v966 = vmul.f32 %v948, 0.5
  %v967 = vmul.f32 %v951, 0.5
  %v968 = vmul.f32 %v954, 0.5
  %v969 = vmul.f32 %v957, 0.5
  %978 = vrot.lane.b32.xlu0 %v959, 96
  %v979 = vpop.permute.xlu0 %978
  %980 = vrot.lane.b32.xlu0 %v960, 96
  %v981 = vpop.permute.xlu0 %980
  %982 = vrot.lane.b32.xlu0 %v961, 96
  %v983 = vpop.permute.xlu0 %982
  %984 = vrot.lane.b32.xlu0 %v962, 96
  %v985 = vpop.permute.xlu0 %984
  %986 = vrot.lane.b32.xlu0 %v963, 96
  %v987 = vpop.permute.xlu0 %986
  %988 = vrot.lane.b32.xlu0 %v964, 96
  %v989 = vpop.permute.xlu0 %988
  %990 = vrot.lane.b32.xlu0 %v965, 96
  %v991 = vpop.permute.xlu0 %990
  %992 = vrot.lane.b32.xlu0 %v966, 96
  %v993 = vpop.permute.xlu0 %992
  %1003 = vrot.lane.b32.xlu0 %v960, 64
  %v1004 = vpop.permute.xlu0 %1003
  %1005 = vrot.lane.b32.xlu0 %v961, 64
  %v1006 = vpop.permute.xlu0 %1005
  %1007 = vrot.lane.b32.xlu0 %v962, 64
  %v1008 = vpop.permute.xlu0 %1007
  %1009 = vrot.lane.b32.xlu0 %v963, 64
  %v1010 = vpop.permute.xlu0 %1009
  %1011 = vrot.lane.b32.xlu0 %v964, 64
  %v1012 = vpop.permute.xlu0 %1011
  %1013 = vrot.lane.b32.xlu0 %v965, 64
  %v1014 = vpop.permute.xlu0 %1013
  %1015 = vrot.lane.b32.xlu0 %v966, 64
  %v1016 = vpop.permute.xlu0 %1015
  %1017 = vrot.lane.b32.xlu0 %v967, 64
  %v1018 = vpop.permute.xlu0 %1017
  %1028 = vrot.lane.b32.xlu0 %v961, 32
  %v1029 = vpop.permute.xlu0 %1028
  %1030 = vrot.lane.b32.xlu0 %v962, 32
  %v1031 = vpop.permute.xlu0 %1030
  %1032 = vrot.lane.b32.xlu0 %v963, 32
  %v1033 = vpop.permute.xlu0 %1032
  %1034 = vrot.lane.b32.xlu0 %v964, 32
  %v1035 = vpop.permute.xlu0 %1034
  %1036 = vrot.lane.b32.xlu0 %v965, 32
  %v1037 = vpop.permute.xlu0 %1036
  %1038 = vrot.lane.b32.xlu0 %v966, 32
  %v1039 = vpop.permute.xlu0 %1038
  %1040 = vrot.lane.b32.xlu0 %v967, 32
  %v1041 = vpop.permute.xlu0 %1040
  %1042 = vrot.lane.b32.xlu0 %v968, 32
  %v1043 = vpop.permute.xlu0 %1042
  %v1052 = vsel %vm921, %v958, %v979
  %v1053 = vsel %vm921, %v959, %v981
  %v1054 = vsel %vm921, %v960, %v983
  %v1055 = vsel %vm921, %v961, %v985
  %v1056 = vsel %vm921, %v962, %v987
  %v1057 = vsel %vm921, %v963, %v989
  %v1058 = vsel %vm921, %v964, %v991
  %v1059 = vsel %vm921, %v965, %v993
  %vm1060 = vcmask 523264
  %v1061 = vsel %vm1060, %v979, %v1004
  %v1062 = vsel %vm1060, %v981, %v1006
  %v1063 = vsel %vm1060, %v983, %v1008
  %v1064 = vsel %vm1060, %v985, %v1010
  %v1065 = vsel %vm1060, %v987, %v1012
  %v1066 = vsel %vm1060, %v989, %v1014
  %v1067 = vsel %vm1060, %v991, %v1016
  %v1068 = vsel %vm1060, %v993, %v1018
  %vm1069 = vcmask 261120
  %v1070 = vsel %vm1069, %v1004, %v1029
  %v1071 = vsel %vm1069, %v1006, %v1031
  %v1072 = vsel %vm1069, %v1008, %v1033
  %v1073 = vsel %vm1069, %v1010, %v1035
  %v1074 = vsel %vm1069, %v1012, %v1037
  %v1075 = vsel %vm1069, %v1014, %v1039
  %v1076 = vsel %vm1069, %v1016, %v1041
  %v1077 = vsel %vm1069, %v1018, %v1043
  %v1078 = vld [vmem:[%s3] sm:$0xff]
  %v1079 = vld [vmem:[%s3 + $0x8] sm:$0xff]
  %v1080 = vld [vmem:[%s3 + $0x10] sm:$0xff]
  %v1081 = vld [vmem:[%s3 + $0x18] sm:$0xff]
  %v1082 = vld [vmem:[%s3 + $0x20] sm:$0xff]
  %v1083 = vld [vmem:[%s3 + $0x28] sm:$0xff]
  %v1084 = vld [vmem:[%s3 + $0x30] sm:$0xff]
  %v1085 = vld [vmem:[%s3 + $0x38] sm:$0xff]
  %v1086 = vld [vmem:[%s3 + $0x40] sm:$0xff]
  %v1087 = vld [vmem:[%s3 + $0x48] sm:$0xff]
  %v1088 = vld [vmem:[%s3 + $0x50] sm:$0xff]
  %v1089 = vld [vmem:[%s3 + $0x58] sm:$0xff]
  %v1090 = vld [vmem:[%s3 + $0x60] sm:$0xff]
  %v1091 = vld [vmem:[%s3 + $0x68] sm:$0xff]
  %v1092 = vld [vmem:[%s3 + $0x70] sm:$0xff]
  %v1093 = vld [vmem:[%s3 + $0x78] sm:$0xff]
  %v1094 = vld [vmem:[%s3 + $0x80] sm:$0xff]
  %v1095 = vld [vmem:[%s3 + $0x88] sm:$0xff]
  %v1096 = vld [vmem:[%s3 + $0x90] sm:$0xff]
  %v1097 = vld [vmem:[%s3 + $0x98] sm:$0xff]
  %v1098 = vld [vmem:[%s3 + $0xa0] sm:$0xff]
  %v1099 = vld [vmem:[%s3 + $0xa8] sm:$0xff]
  %v1100 = vld [vmem:[%s3 + $0xb0] sm:$0xff]
  %v1101 = vld [vmem:[%s3 + $0xb8] sm:$0xff]
  %v1102 = vld [vmem:[%s3 + $0xc0] sm:$0xff]
  %v1103 = vld [vmem:[%s3 + $0xc8] sm:$0xff]
  %v1104 = vld [vmem:[%s3 + $0xd0] sm:$0xff]
  %v1105 = vld [vmem:[%s3 + $0xd8] sm:$0xff]
  %v1106 = vld [vmem:[%s3 + $0xe0] sm:$0xff]
  %v1107 = vld [vmem:[%s3 + $0xe8] sm:$0xff]
  %v1108 = vld [vmem:[%s3 + $0xf0] sm:$0xff]
  %v1109 = vld [vmem:[%s3 + $0xf8] sm:$0xff]
  %v1110 = vld [vmem:[%s3 + $0x100] sm:$0xff]
  %v1111 = vld [vmem:[%s3 + $0x108] sm:$0xff]
  %v1112 = vld [vmem:[%s3 + $0x110] sm:$0xff]
  %v1113 = vld [vmem:[%s3 + $0x118] sm:$0xff]
  %v1114 = vld [vmem:[%s3 + $0x120] sm:$0xff]
  %v1115 = vld [vmem:[%s3 + $0x128] sm:$0xff]
  %v1116 = vld [vmem:[%s3 + $0x130] sm:$0xff]
  %v1117 = vld [vmem:[%s3 + $0x138] sm:$0xff]
  %v1118 = vld [vmem:[%s3 + $0x140] sm:$0xff]
  %v1119 = vld [vmem:[%s3 + $0x148] sm:$0xff]
  %v1120 = vld [vmem:[%s3 + $0x150] sm:$0xff]
  %v1121 = vld [vmem:[%s3 + $0x158] sm:$0xff]
  %v1122 = vld [vmem:[%s3 + $0x160] sm:$0xff]
  %v1123 = vld [vmem:[%s3 + $0x168] sm:$0xff]
  %v1124 = vld [vmem:[%s3 + $0x170] sm:$0xff]
  %v1125 = vld [vmem:[%s3 + $0x178] sm:$0xff]
  %v1126 = vld [vmem:[%s3 + $0x180] sm:$0xff]
  %v1127 = vld [vmem:[%s3 + $0x188] sm:$0xff]
  %v1128 = vld [vmem:[%s3 + $0x190] sm:$0xff]
  %v1129 = vld [vmem:[%s3 + $0x198] sm:$0xff]
  %v1130 = vld [vmem:[%s3 + $0x1a0] sm:$0xff]
  %v1131 = vld [vmem:[%s3 + $0x1a8] sm:$0xff]
  %v1132 = vld [vmem:[%s3 + $0x1b0] sm:$0xff]
  %v1133 = vld [vmem:[%s3 + $0x1b8] sm:$0xff]
  %v1134 = vld [vmem:[%s3 + $0x1c0] sm:$0xff]
  %v1135 = vld [vmem:[%s3 + $0x1c8] sm:$0xff]
  %v1136 = vld [vmem:[%s3 + $0x1d0] sm:$0xff]
  %v1137 = vld [vmem:[%s3 + $0x1d8] sm:$0xff]
  %v1138 = vld [vmem:[%s4] sm:$0x1]
  %v1140 = vlaneseq
  %v1141 = vshrl.u32 %v1140, 7
  %v1142 = vsub.s32 0, %v1141
  %v1143 = vrot.slane %v1138, %v1142
  %v1145 = vsel %vm921, %v962, 0
  %v1147 = vsel %vm921, %v963, 0
  %v1149 = vsel %vm921, %v964, 0
  %v1151 = vsel %vm921, %v965, 0
  %v1153 = vsel %vm921, %v966, 0
  %v1155 = vsel %vm921, %v967, 0
  %v1157 = vsel %vm921, %v968, 0
  %v1160 = vsel %vm921, %v969, 0
  %1162 = vmatprep.subr.mxu0 0.0
  %1163 = vmatpush1.msra.mxu0 %v1093
  %1164 = vmatprep.subr.mxu0 0.0
  %1165 = vmatpush1.msra.mxu0 %v1092
  %1166 = vmatprep.subr.mxu0 0.0
  %1167 = vmatpush1.msra.mxu0 %v1091
  %1168 = vmatprep.subr.mxu0 0.0
  %1169 = vmatpush1.msra.mxu0 %v1090
  %1170 = vmatprep.subr.mxu0 0.0
  %1171 = vmatpush1.msra.mxu0 %v1089
  %1172 = vmatprep.subr.mxu0 0.0
  %1173 = vmatpush1.msra.mxu0 %v1088
  %1174 = vmatprep.subr.mxu0 0.0
  %1175 = vmatpush1.msra.mxu0 %v1087
  %1176 = vmatprep.subr.mxu0 0.0
  %1177 = vmatpush1.msra.mxu0 %v1086
  %1178 = vmatprep.subr.mxu0 0.0
  %1179 = vmatpush1.msra.mxu0 %v1085
  %1180 = vmatprep.subr.mxu0 0.0
  %1181 = vmatpush1.msra.mxu0 %v1084
  %1182 = vmatprep.subr.mxu0 0.0
  %1183 = vmatpush1.msra.mxu0 %v1083
  %1184 = vmatprep.subr.mxu0 0.0
  %1185 = vmatpush1.msra.mxu0 %v1082
  %1186 = vmatprep.subr.mxu0 0.0
  %1187 = vmatpush1.msra.mxu0 %v1081
  %1188 = vmatprep.subr.mxu0 0.0
  %1189 = vmatpush1.msra.mxu0 %v1080
  %1190 = vmatprep.subr.mxu0 0.0
  %1191 = vmatpush1.msra.mxu0 %v1079
  %1192 = vmatprep.subr.mxu0 0.0
  %1193 = vmatpush1.msra.mxu0 %v1078
  %1194 = vmatprep.subr.mxu0 0.0
  %1195 = vmatpush2.msra.mxu0 %v1109
  %1196 = vmatprep.subr.mxu0 0.0
  %1197 = vmatpush2.msra.mxu0 %v1108
  %1198 = vmatprep.subr.mxu0 0.0
  %1199 = vmatpush2.msra.mxu0 %v1107
  %1200 = vmatprep.subr.mxu0 0.0
  %1201 = vmatpush2.msra.mxu0 %v1106
  %1202 = vmatprep.subr.mxu0 0.0
  %1203 = vmatpush2.msra.mxu0 %v1105
  %1204 = vmatprep.subr.mxu0 0.0
  %1205 = vmatpush2.msra.mxu0 %v1104
  %1206 = vmatprep.subr.mxu0 0.0
  %1207 = vmatpush2.msra.mxu0 %v1103
  %1208 = vmatprep.subr.mxu0 0.0
  %1209 = vmatpush2.msra.mxu0 %v1102
  %1210 = vmatprep.subr.mxu0 0.0
  %1211 = vmatpush2.msra.mxu0 %v1101
  %1212 = vmatprep.subr.mxu0 0.0
  %1213 = vmatpush2.msra.mxu0 %v1100
  %1214 = vmatprep.subr.mxu0 0.0
  %1215 = vmatpush2.msra.mxu0 %v1099
  %1216 = vmatprep.subr.mxu0 0.0
  %1217 = vmatpush2.msra.mxu0 %v1098
  %1218 = vmatprep.subr.mxu0 0.0
  %1219 = vmatpush2.msra.mxu0 %v1097
  %1220 = vmatprep.subr.mxu0 0.0
  %1221 = vmatpush2.msra.mxu0 %v1096
  %1222 = vmatprep.subr.mxu0 0.0
  %1223 = vmatpush2.msra.mxu0 %v1095
  %1224 = vmatprep.subr.mxu0 0.0
  %1225 = vmatpush2.msra.mxu0 %v1094
  %1226 = vmatprep.mubr.f32.mxu0 %v1061
  %1227 = vmatmul.mubr.f32.gmra.mxu0 %v1052
  %v1228 = vpop.f32.mrf.mxu0
  %v1229 = vadd.f32 %v1143, %v1228
  %v1230 = vpop.f32.mrf.mxu0
  %1231 = vmatprep.mubr.f32.mxu0 %v1062
  %1232 = vmatmul.mubr.f32.gmra.mxu0 %v1053
  %v1233 = vpop.f32.mrf.mxu0
  %v1234 = vadd.f32 %v1143, %v1233
  %v1235 = vpop.f32.mrf.mxu0
  %1236 = vmatprep.mubr.f32.mxu0 %v1063
  %1237 = vmatmul.mubr.f32.gmra.mxu0 %v1054
  %v1238 = vpop.f32.mrf.mxu0
  %v1239 = vadd.f32 %v1143, %v1238
  %v1240 = vpop.f32.mrf.mxu0
  %1241 = vmatprep.mubr.f32.mxu0 %v1064
  %1242 = vmatmul.mubr.f32.gmra.mxu0 %v1055
  %v1243 = vpop.f32.mrf.mxu0
  %v1244 = vadd.f32 %v1143, %v1243
  %v1245 = vpop.f32.mrf.mxu0
  %1246 = vmatprep.mubr.f32.mxu0 %v1065
  %1247 = vmatmul.mubr.f32.gmra.mxu0 %v1056
  %v1248 = vpop.f32.mrf.mxu0
  %v1249 = vadd.f32 %v1143, %v1248
  %v1250 = vpop.f32.mrf.mxu0
  %1251 = vmatprep.mubr.f32.mxu0 %v1066
  %1252 = vmatmul.mubr.f32.gmra.mxu0 %v1057
  %v1253 = vpop.f32.mrf.mxu0
  %v1254 = vadd.f32 %v1143, %v1253
  %v1255 = vpop.f32.mrf.mxu0
  %1256 = vmatprep.mubr.f32.mxu0 %v1067
  %1257 = vmatmul.mubr.f32.gmra.mxu0 %v1058
  %v1258 = vpop.f32.mrf.mxu0
  %v1259 = vadd.f32 %v1143, %v1258
  %v1260 = vpop.f32.mrf.mxu0
  %1261 = vmatprep.mubr.f32.mxu0 %v1068
  %1262 = vmatmul.mubr.f32.gmra.mxu0 %v1059
  %v1263 = vpop.f32.mrf.mxu0
  %v1264 = vadd.f32 %v1143, %v1263
  %v1265 = vpop.f32.mrf.mxu0
  %1266 = vdwg.mxu0
  %1267 = vmatprep.subr.mxu0 0.0
  %1268 = vmatpush1.msra.mxu0 %v1125
  %1269 = vmatprep.subr.mxu0 0.0
  %1270 = vmatpush1.msra.mxu0 %v1124
  %1271 = vmatprep.subr.mxu0 0.0
  %1272 = vmatpush1.msra.mxu0 %v1123
  %1273 = vmatprep.subr.mxu0 0.0
  %1274 = vmatpush1.msra.mxu0 %v1122
  %1275 = vmatprep.subr.mxu0 0.0
  %1276 = vmatpush1.msra.mxu0 %v1121
  %1277 = vmatprep.subr.mxu0 0.0
  %1278 = vmatpush1.msra.mxu0 %v1120
  %1279 = vmatprep.subr.mxu0 0.0
  %1280 = vmatpush1.msra.mxu0 %v1119
  %1281 = vmatprep.subr.mxu0 0.0
  %1282 = vmatpush1.msra.mxu0 %v1118
  %1283 = vmatprep.subr.mxu0 0.0
  %1284 = vmatpush1.msra.mxu0 %v1117
  %1285 = vmatprep.subr.mxu0 0.0
  %1286 = vmatpush1.msra.mxu0 %v1116
  %1287 = vmatprep.subr.mxu0 0.0
  %1288 = vmatpush1.msra.mxu0 %v1115
  %1289 = vmatprep.subr.mxu0 0.0
  %1290 = vmatpush1.msra.mxu0 %v1114
  %1291 = vmatprep.subr.mxu0 0.0
  %1292 = vmatpush1.msra.mxu0 %v1113
  %1293 = vmatprep.subr.mxu0 0.0
  %1294 = vmatpush1.msra.mxu0 %v1112
  %1295 = vmatprep.subr.mxu0 0.0
  %1296 = vmatpush1.msra.mxu0 %v1111
  %1297 = vmatprep.subr.mxu0 0.0
  %1298 = vmatpush1.msra.mxu0 %v1110
  %1299 = vmatprep.subr.mxu0 0.0
  %1300 = vmatpush2.msra.mxu0 0.0
  %1301 = vmatprep.subr.mxu0 0.0
  %1302 = vmatpush2.msra.mxu0 0.0
  %1303 = vmatprep.subr.mxu0 0.0
  %1304 = vmatpush2.msra.mxu0 0.0
  %1305 = vmatprep.subr.mxu0 0.0
  %1306 = vmatpush2.msra.mxu0 0.0
  %1307 = vmatprep.subr.mxu0 0.0
  %1308 = vmatpush2.msra.mxu0 %v1137
  %1309 = vmatprep.subr.mxu0 0.0
  %1310 = vmatpush2.msra.mxu0 %v1136
  %1311 = vmatprep.subr.mxu0 0.0
  %1312 = vmatpush2.msra.mxu0 %v1135
  %1313 = vmatprep.subr.mxu0 0.0
  %1314 = vmatpush2.msra.mxu0 %v1134
  %1315 = vmatprep.subr.mxu0 0.0
  %1316 = vmatpush2.msra.mxu0 %v1133
  %1317 = vmatprep.subr.mxu0 0.0
  %1318 = vmatpush2.msra.mxu0 %v1132
  %1319 = vmatprep.subr.mxu0 0.0
  %1320 = vmatpush2.msra.mxu0 %v1131
  %1321 = vmatprep.subr.mxu0 0.0
  %1322 = vmatpush2.msra.mxu0 %v1130
  %1323 = vmatprep.subr.mxu0 0.0
  %1324 = vmatpush2.msra.mxu0 %v1129
  %1325 = vmatprep.subr.mxu0 0.0
  %1326 = vmatpush2.msra.mxu0 %v1128
  %1327 = vmatprep.subr.mxu0 0.0
  %1328 = vmatpush2.msra.mxu0 %v1127
  %1329 = vmatprep.subr.mxu0 0.0
  %1330 = vmatpush2.msra.mxu0 %v1126
  %1331 = vmatprep.mubr.f32.mxu0 %v1145
  %1332 = vmatmul.mubr.f32.gmra.mxu0 %v1070
  %v1333 = vpop.f32.mrf.mxu0
  %v1334 = vadd.f32 %v1229, %v1333
  %v1335 = vpop.f32.mrf.mxu0
  %1336 = vmatprep.mubr.f32.mxu0 %v1147
  %1337 = vmatmul.mubr.f32.gmra.mxu0 %v1071
  %v1338 = vpop.f32.mrf.mxu0
  %v1339 = vadd.f32 %v1234, %v1338
  %v1340 = vpop.f32.mrf.mxu0
  %1341 = vmatprep.mubr.f32.mxu0 %v1149
  %1342 = vmatmul.mubr.f32.gmra.mxu0 %v1072
  %v1343 = vpop.f32.mrf.mxu0
  %v1344 = vadd.f32 %v1239, %v1343
  %v1345 = vpop.f32.mrf.mxu0
  %1346 = vmatprep.mubr.f32.mxu0 %v1151
  %1347 = vmatmul.mubr.f32.gmra.mxu0 %v1073
  %v1348 = vpop.f32.mrf.mxu0
  %v1349 = vadd.f32 %v1244, %v1348
  %v1350 = vpop.f32.mrf.mxu0
  %1351 = vmatprep.mubr.f32.mxu0 %v1153
  %1352 = vmatmul.mubr.f32.gmra.mxu0 %v1074
  %v1353 = vpop.f32.mrf.mxu0
  %v1354 = vadd.f32 %v1249, %v1353
  %v1355 = vpop.f32.mrf.mxu0
  %1356 = vmatprep.mubr.f32.mxu0 %v1155
  %1357 = vmatmul.mubr.f32.gmra.mxu0 %v1075
  %v1358 = vpop.f32.mrf.mxu0
  %v1359 = vadd.f32 %v1254, %v1358
  %v1360 = vpop.f32.mrf.mxu0
  %1361 = vmatprep.mubr.f32.mxu0 %v1157
  %1362 = vmatmul.mubr.f32.gmra.mxu0 %v1076
  %v1363 = vpop.f32.mrf.mxu0
  %v1364 = vadd.f32 %v1259, %v1363
  %v1365 = vpop.f32.mrf.mxu0
  %1366 = vmatprep.mubr.f32.mxu0 %v1160
  %1367 = vmatmul.mubr.f32.gmra.mxu0 %v1077
  %v1368 = vpop.f32.mrf.mxu0
  %v1369 = vadd.f32 %v1264, %v1368
  %v1370 = vpop.f32.mrf.mxu0
  %1371 = vdwg.mxu0
  %v1372 = vmul.f32 %v1334, %v1334
  %v1373 = vmul.f32 %v1339, %v1339
  %v1374 = vmul.f32 %v1344, %v1344
  %v1375 = vmul.f32 %v1349, %v1349
  %v1376 = vmul.f32 %v1354, %v1354
  %v1377 = vmul.f32 %v1359, %v1359
  %v1378 = vmul.f32 %v1364, %v1364
  %v1379 = vmul.f32 %v1369, %v1369
  %v1380 = vsel %vm921, %v1372, 0.0
  %v1381 = vsel %vm921, %v1373, 0.0
  %v1382 = vadd.f32 %v1380, %v1381
  %v1383 = vsel %vm921, %v1374, 0.0
  %v1384 = vsel %vm921, %v1375, 0.0
  %v1385 = vadd.f32 %v1383, %v1384
  %v1386 = vsel %vm921, %v1376, 0.0
  %v1387 = vsel %vm921, %v1377, 0.0
  %v1388 = vadd.f32 %v1386, %v1387
  %v1389 = vsel %vm921, %v1378, 0.0
  %v1390 = vsel %vm921, %v1379, 0.0
  %v1391 = vadd.f32 %v1389, %v1390
  %v1392 = vmul.f32 %v1382, 0.5
  %v1393 = vmul.f32 %v1385, 0.5
  %v1394 = vmul.f32 %v1388, 0.5
  %v1395 = vmul.f32 %v1391, 0.5
  %v1396 = vld [vmem:[%s6] sm:$0x1]
  %v1397 = vld [vmem:[%s5] sm:$0xff]
  %v1398 = vld [vmem:[%s5 + $0x8] sm:$0xff]
  %v1399 = vld [vmem:[%s5 + $0x10] sm:$0xff]
  %v1400 = vld [vmem:[%s5 + $0x18] sm:$0xff]
  %v1401 = vld [vmem:[%s5 + $0x20] sm:$0xff]
  %v1402 = vld [vmem:[%s5 + $0x28] sm:$0xff]
  %v1403 = vld [vmem:[%s5 + $0x30] sm:$0xff]
  %v1404 = vld [vmem:[%s5 + $0x38] sm:$0xff]
  %v1405 = vld [vmem:[%s5 + $0x40] sm:$0xff]
  %v1406 = vld [vmem:[%s5 + $0x48] sm:$0xff]
  %v1407 = vld [vmem:[%s5 + $0x50] sm:$0xff]
  %v1408 = vld [vmem:[%s5 + $0x58] sm:$0xff]
  %v1410 = vsel %vm921, %v1392, 0
  %1412 = vmatprep.subr.mxu0 0.0
  %1413 = vmatpush1.msra.mxu0 0.0
  %1414 = vmatprep.subr.mxu0 0.0
  %1415 = vmatpush1.msra.mxu0 0.0
  %1416 = vmatprep.subr.mxu0 0.0
  %1417 = vmatpush1.msra.mxu0 0.0
  %1418 = vmatprep.subr.mxu0 0.0
  %1419 = vmatpush1.msra.mxu0 0.0
  %1420 = vmatprep.subr.mxu0 0.0
  %1421 = vmatpush1.msra.mxu0 %v1408
  %1422 = vmatprep.subr.mxu0 0.0
  %1423 = vmatpush1.msra.mxu0 %v1407
  %1424 = vmatprep.subr.mxu0 0.0
  %1425 = vmatpush1.msra.mxu0 %v1406
  %1426 = vmatprep.subr.mxu0 0.0
  %1427 = vmatpush1.msra.mxu0 %v1405
  %1428 = vmatprep.subr.mxu0 0.0
  %1429 = vmatpush1.msra.mxu0 %v1404
  %1430 = vmatprep.subr.mxu0 0.0
  %1431 = vmatpush1.msra.mxu0 %v1403
  %1432 = vmatprep.subr.mxu0 0.0
  %1433 = vmatpush1.msra.mxu0 %v1402
  %1434 = vmatprep.subr.mxu0 0.0
  %1435 = vmatpush1.msra.mxu0 %v1401
  %1436 = vmatprep.subr.mxu0 0.0
  %1437 = vmatpush1.msra.mxu0 %v1400
  %1438 = vmatprep.subr.mxu0 0.0
  %1439 = vmatpush1.msra.mxu0 %v1399
  %1440 = vmatprep.subr.mxu0 0.0
  %1441 = vmatpush1.msra.mxu0 %v1398
  %1442 = vmatprep.subr.mxu0 0.0
  %1443 = vmatpush1.msra.mxu0 %v1397
  %1444 = vmatprep.subr.mxu0 0.0
  %1445 = vmatpush2.msra.mxu0 0.0
  %1446 = vmatprep.subr.mxu0 0.0
  %1447 = vmatpush2.msra.mxu0 0.0
  %1448 = vmatprep.subr.mxu0 0.0
  %1449 = vmatpush2.msra.mxu0 0.0
  %1450 = vmatprep.subr.mxu0 0.0
  %1451 = vmatpush2.msra.mxu0 0.0
  %1452 = vmatprep.subr.mxu0 0.0
  %1453 = vmatpush2.msra.mxu0 0.0
  %1454 = vmatprep.subr.mxu0 0.0
  %1455 = vmatpush2.msra.mxu0 0.0
  %1456 = vmatprep.subr.mxu0 0.0
  %1457 = vmatpush2.msra.mxu0 0.0
  %1458 = vmatprep.subr.mxu0 0.0
  %1459 = vmatpush2.msra.mxu0 0.0
  %1460 = vmatprep.subr.mxu0 0.0
  %1461 = vmatpush2.msra.mxu0 0.0
  %1462 = vmatprep.subr.mxu0 0.0
  %1463 = vmatpush2.msra.mxu0 0.0
  %1464 = vmatprep.subr.mxu0 0.0
  %1465 = vmatpush2.msra.mxu0 0.0
  %1466 = vmatprep.subr.mxu0 0.0
  %1467 = vmatpush2.msra.mxu0 0.0
  %1468 = vmatprep.subr.mxu0 0.0
  %1469 = vmatpush2.msra.mxu0 0.0
  %1470 = vmatprep.subr.mxu0 0.0
  %1471 = vmatpush2.msra.mxu0 0.0
  %1472 = vmatprep.subr.mxu0 0.0
  %1473 = vmatpush2.msra.mxu0 0.0
  %1474 = vmatprep.subr.mxu0 0.0
  %1475 = vmatpush2.msra.mxu0 0.0
  %1476 = vmatprep.mubr.f32.mxu0 0.0
  %1477 = vmatmul.mubr.f32.gmra.mxu0 %v1410
  %v1478 = vpop.f32.mrf.mxu0
  %v1479 = vadd.f32 0.0, %v1478
  %v1480 = vpop.f32.mrf.mxu0
  %1481 = vdwg.mxu0
  %v1483 = vlaneseq
  %v1484 = vshrl.u32 %v1483, 7
  %v1485 = vsub.s32 0, %v1484
  %v1486 = vrot.slane %v1396, %v1485
  %v1488 = vadd.f32 %v1486, %v1479
  %s1489 = scalar_lea.vmem %s5, 96
  %v1490 = vld [vmem:[%s1489] sm:$0xff]
  %v1491 = vld [vmem:[%s1489 + $0x8] sm:$0xff]
  %v1492 = vld [vmem:[%s1489 + $0x10] sm:$0xff]
  %v1493 = vld [vmem:[%s1489 + $0x18] sm:$0xff]
  %v1494 = vld [vmem:[%s1489 + $0x20] sm:$0xff]
  %v1495 = vld [vmem:[%s1489 + $0x28] sm:$0xff]
  %v1496 = vld [vmem:[%s1489 + $0x30] sm:$0xff]
  %v1497 = vld [vmem:[%s1489 + $0x38] sm:$0xff]
  %v1498 = vld [vmem:[%s1489 + $0x40] sm:$0xff]
  %v1499 = vld [vmem:[%s1489 + $0x48] sm:$0xff]
  %v1500 = vld [vmem:[%s1489 + $0x50] sm:$0xff]
  %v1501 = vld [vmem:[%s1489 + $0x58] sm:$0xff]
  %v1503 = vsel %vm921, %v1393, 0
  %1505 = vmatprep.subr.mxu0 0.0
  %1506 = vmatpush1.msra.mxu0 0.0
  %1507 = vmatprep.subr.mxu0 0.0
  %1508 = vmatpush1.msra.mxu0 0.0
  %1509 = vmatprep.subr.mxu0 0.0
  %1510 = vmatpush1.msra.mxu0 0.0
  %1511 = vmatprep.subr.mxu0 0.0
  %1512 = vmatpush1.msra.mxu0 0.0
  %1513 = vmatprep.subr.mxu0 0.0
  %1514 = vmatpush1.msra.mxu0 %v1501
  %1515 = vmatprep.subr.mxu0 0.0
  %1516 = vmatpush1.msra.mxu0 %v1500
  %1517 = vmatprep.subr.mxu0 0.0
  %1518 = vmatpush1.msra.mxu0 %v1499
  %1519 = vmatprep.subr.mxu0 0.0
  %1520 = vmatpush1.msra.mxu0 %v1498
  %1521 = vmatprep.subr.mxu0 0.0
  %1522 = vmatpush1.msra.mxu0 %v1497
  %1523 = vmatprep.subr.mxu0 0.0
  %1524 = vmatpush1.msra.mxu0 %v1496
  %1525 = vmatprep.subr.mxu0 0.0
  %1526 = vmatpush1.msra.mxu0 %v1495
  %1527 = vmatprep.subr.mxu0 0.0
  %1528 = vmatpush1.msra.mxu0 %v1494
  %1529 = vmatprep.subr.mxu0 0.0
  %1530 = vmatpush1.msra.mxu0 %v1493
  %1531 = vmatprep.subr.mxu0 0.0
  %1532 = vmatpush1.msra.mxu0 %v1492
  %1533 = vmatprep.subr.mxu0 0.0
  %1534 = vmatpush1.msra.mxu0 %v1491
  %1535 = vmatprep.subr.mxu0 0.0
  %1536 = vmatpush1.msra.mxu0 %v1490
  %1537 = vmatprep.subr.mxu0 0.0
  %1538 = vmatpush2.msra.mxu0 0.0
  %1539 = vmatprep.subr.mxu0 0.0
  %1540 = vmatpush2.msra.mxu0 0.0
  %1541 = vmatprep.subr.mxu0 0.0
  %1542 = vmatpush2.msra.mxu0 0.0
  %1543 = vmatprep.subr.mxu0 0.0
  %1544 = vmatpush2.msra.mxu0 0.0
  %1545 = vmatprep.subr.mxu0 0.0
  %1546 = vmatpush2.msra.mxu0 0.0
  %1547 = vmatprep.subr.mxu0 0.0
  %1548 = vmatpush2.msra.mxu0 0.0
  %1549 = vmatprep.subr.mxu0 0.0
  %1550 = vmatpush2.msra.mxu0 0.0
  %1551 = vmatprep.subr.mxu0 0.0
  %1552 = vmatpush2.msra.mxu0 0.0
  %1553 = vmatprep.subr.mxu0 0.0
  %1554 = vmatpush2.msra.mxu0 0.0
  %1555 = vmatprep.subr.mxu0 0.0
  %1556 = vmatpush2.msra.mxu0 0.0
  %1557 = vmatprep.subr.mxu0 0.0
  %1558 = vmatpush2.msra.mxu0 0.0
  %1559 = vmatprep.subr.mxu0 0.0
  %1560 = vmatpush2.msra.mxu0 0.0
  %1561 = vmatprep.subr.mxu0 0.0
  %1562 = vmatpush2.msra.mxu0 0.0
  %1563 = vmatprep.subr.mxu0 0.0
  %1564 = vmatpush2.msra.mxu0 0.0
  %1565 = vmatprep.subr.mxu0 0.0
  %1566 = vmatpush2.msra.mxu0 0.0
  %1567 = vmatprep.subr.mxu0 0.0
  %1568 = vmatpush2.msra.mxu0 0.0
  %1569 = vmatprep.mubr.f32.mxu0 0.0
  %1570 = vmatmul.mubr.f32.gmra.mxu0 %v1503
  %v1571 = vpop.f32.mrf.mxu0
  %v1572 = vadd.f32 0.0, %v1571
  %v1573 = vpop.f32.mrf.mxu0
  %1574 = vdwg.mxu0
  %v1575 = vadd.f32 %v1488, %v1572
  %s1576 = scalar_lea.vmem %s5, 192
  %v1577 = vld [vmem:[%s1576] sm:$0xff]
  %v1578 = vld [vmem:[%s1576 + $0x8] sm:$0xff]
  %v1579 = vld [vmem:[%s1576 + $0x10] sm:$0xff]
  %v1580 = vld [vmem:[%s1576 + $0x18] sm:$0xff]
  %v1581 = vld [vmem:[%s1576 + $0x20] sm:$0xff]
  %v1582 = vld [vmem:[%s1576 + $0x28] sm:$0xff]
  %v1583 = vld [vmem:[%s1576 + $0x30] sm:$0xff]
  %v1584 = vld [vmem:[%s1576 + $0x38] sm:$0xff]
  %v1585 = vld [vmem:[%s1576 + $0x40] sm:$0xff]
  %v1586 = vld [vmem:[%s1576 + $0x48] sm:$0xff]
  %v1587 = vld [vmem:[%s1576 + $0x50] sm:$0xff]
  %v1588 = vld [vmem:[%s1576 + $0x58] sm:$0xff]
  %v1590 = vsel %vm921, %v1394, 0
  %1592 = vmatprep.subr.mxu0 0.0
  %1593 = vmatpush1.msra.mxu0 0.0
  %1594 = vmatprep.subr.mxu0 0.0
  %1595 = vmatpush1.msra.mxu0 0.0
  %1596 = vmatprep.subr.mxu0 0.0
  %1597 = vmatpush1.msra.mxu0 0.0
  %1598 = vmatprep.subr.mxu0 0.0
  %1599 = vmatpush1.msra.mxu0 0.0
  %1600 = vmatprep.subr.mxu0 0.0
  %1601 = vmatpush1.msra.mxu0 %v1588
  %1602 = vmatprep.subr.mxu0 0.0
  %1603 = vmatpush1.msra.mxu0 %v1587
  %1604 = vmatprep.subr.mxu0 0.0
  %1605 = vmatpush1.msra.mxu0 %v1586
  %1606 = vmatprep.subr.mxu0 0.0
  %1607 = vmatpush1.msra.mxu0 %v1585
  %1608 = vmatprep.subr.mxu0 0.0
  %1609 = vmatpush1.msra.mxu0 %v1584
  %1610 = vmatprep.subr.mxu0 0.0
  %1611 = vmatpush1.msra.mxu0 %v1583
  %1612 = vmatprep.subr.mxu0 0.0
  %1613 = vmatpush1.msra.mxu0 %v1582
  %1614 = vmatprep.subr.mxu0 0.0
  %1615 = vmatpush1.msra.mxu0 %v1581
  %1616 = vmatprep.subr.mxu0 0.0
  %1617 = vmatpush1.msra.mxu0 %v1580
  %1618 = vmatprep.subr.mxu0 0.0
  %1619 = vmatpush1.msra.mxu0 %v1579
  %1620 = vmatprep.subr.mxu0 0.0
  %1621 = vmatpush1.msra.mxu0 %v1578
  %1622 = vmatprep.subr.mxu0 0.0
  %1623 = vmatpush1.msra.mxu0 %v1577
  %1624 = vmatprep.subr.mxu0 0.0
  %1625 = vmatpush2.msra.mxu0 0.0
  %1626 = vmatprep.subr.mxu0 0.0
  %1627 = vmatpush2.msra.mxu0 0.0
  %1628 = vmatprep.subr.mxu0 0.0
  %1629 = vmatpush2.msra.mxu0 0.0
  %1630 = vmatprep.subr.mxu0 0.0
  %1631 = vmatpush2.msra.mxu0 0.0
  %1632 = vmatprep.subr.mxu0 0.0
  %1633 = vmatpush2.msra.mxu0 0.0
  %1634 = vmatprep.subr.mxu0 0.0
  %1635 = vmatpush2.msra.mxu0 0.0
  %1636 = vmatprep.subr.mxu0 0.0
  %1637 = vmatpush2.msra.mxu0 0.0
  %1638 = vmatprep.subr.mxu0 0.0
  %1639 = vmatpush2.msra.mxu0 0.0
  %1640 = vmatprep.subr.mxu0 0.0
  %1641 = vmatpush2.msra.mxu0 0.0
  %1642 = vmatprep.subr.mxu0 0.0
  %1643 = vmatpush2.msra.mxu0 0.0
  %1644 = vmatprep.subr.mxu0 0.0
  %1645 = vmatpush2.msra.mxu0 0.0
  %1646 = vmatprep.subr.mxu0 0.0
  %1647 = vmatpush2.msra.mxu0 0.0
  %1648 = vmatprep.subr.mxu0 0.0
  %1649 = vmatpush2.msra.mxu0 0.0
  %1650 = vmatprep.subr.mxu0 0.0
  %1651 = vmatpush2.msra.mxu0 0.0
  %1652 = vmatprep.subr.mxu0 0.0
  %1653 = vmatpush2.msra.mxu0 0.0
  %1654 = vmatprep.subr.mxu0 0.0
  %1655 = vmatpush2.msra.mxu0 0.0
  %1656 = vmatprep.mubr.f32.mxu0 0.0
  %1657 = vmatmul.mubr.f32.gmra.mxu0 %v1590
  %v1658 = vpop.f32.mrf.mxu0
  %v1659 = vadd.f32 0.0, %v1658
  %v1660 = vpop.f32.mrf.mxu0
  %1661 = vdwg.mxu0
  %v1662 = vadd.f32 %v1575, %v1659
  %s1663 = scalar_lea.vmem %s5, 288
  %v1664 = vld [vmem:[%s1663] sm:$0xff]
  %v1665 = vld [vmem:[%s1663 + $0x8] sm:$0xff]
  %v1666 = vld [vmem:[%s1663 + $0x10] sm:$0xff]
  %v1667 = vld [vmem:[%s1663 + $0x18] sm:$0xff]
  %v1668 = vld [vmem:[%s1663 + $0x20] sm:$0xff]
  %v1669 = vld [vmem:[%s1663 + $0x28] sm:$0xff]
  %v1670 = vld [vmem:[%s1663 + $0x30] sm:$0xff]
  %v1671 = vld [vmem:[%s1663 + $0x38] sm:$0xff]
  %v1672 = vld [vmem:[%s1663 + $0x40] sm:$0xff]
  %v1673 = vld [vmem:[%s1663 + $0x48] sm:$0xff]
  %v1674 = vld [vmem:[%s1663 + $0x50] sm:$0xff]
  %v1675 = vld [vmem:[%s1663 + $0x58] sm:$0xff]
  %v1677 = vsel %vm921, %v1395, 0
  %1679 = vmatprep.subr.mxu0 0.0
  %1680 = vmatpush1.msra.mxu0 0.0
  %1681 = vmatprep.subr.mxu0 0.0
  %1682 = vmatpush1.msra.mxu0 0.0
  %1683 = vmatprep.subr.mxu0 0.0
  %1684 = vmatpush1.msra.mxu0 0.0
  %1685 = vmatprep.subr.mxu0 0.0
  %1686 = vmatpush1.msra.mxu0 0.0
  %1687 = vmatprep.subr.mxu0 0.0
  %1688 = vmatpush1.msra.mxu0 %v1675
  %1689 = vmatprep.subr.mxu0 0.0
  %1690 = vmatpush1.msra.mxu0 %v1674
  %1691 = vmatprep.subr.mxu0 0.0
  %1692 = vmatpush1.msra.mxu0 %v1673
  %1693 = vmatprep.subr.mxu0 0.0
  %1694 = vmatpush1.msra.mxu0 %v1672
  %1695 = vmatprep.subr.mxu0 0.0
  %1696 = vmatpush1.msra.mxu0 %v1671
  %1697 = vmatprep.subr.mxu0 0.0
  %1698 = vmatpush1.msra.mxu0 %v1670
  %1699 = vmatprep.subr.mxu0 0.0
  %1700 = vmatpush1.msra.mxu0 %v1669
  %1701 = vmatprep.subr.mxu0 0.0
  %1702 = vmatpush1.msra.mxu0 %v1668
  %1703 = vmatprep.subr.mxu0 0.0
  %1704 = vmatpush1.msra.mxu0 %v1667
  %1705 = vmatprep.subr.mxu0 0.0
  %1706 = vmatpush1.msra.mxu0 %v1666
  %1707 = vmatprep.subr.mxu0 0.0
  %1708 = vmatpush1.msra.mxu0 %v1665
  %1709 = vmatprep.subr.mxu0 0.0
  %1710 = vmatpush1.msra.mxu0 %v1664
  %1711 = vmatprep.subr.mxu0 0.0
  %1712 = vmatpush2.msra.mxu0 0.0
  %1713 = vmatprep.subr.mxu0 0.0
  %1714 = vmatpush2.msra.mxu0 0.0
  %1715 = vmatprep.subr.mxu0 0.0
  %1716 = vmatpush2.msra.mxu0 0.0
  %1717 = vmatprep.subr.mxu0 0.0
  %1718 = vmatpush2.msra.mxu0 0.0
  %1719 = vmatprep.subr.mxu0 0.0
  %1720 = vmatpush2.msra.mxu0 0.0
  %1721 = vmatprep.subr.mxu0 0.0
  %1722 = vmatpush2.msra.mxu0 0.0
  %1723 = vmatprep.subr.mxu0 0.0
  %1724 = vmatpush2.msra.mxu0 0.0
  %1725 = vmatprep.subr.mxu0 0.0
  %1726 = vmatpush2.msra.mxu0 0.0
  %1727 = vmatprep.subr.mxu0 0.0
  %1728 = vmatpush2.msra.mxu0 0.0
  %1729 = vmatprep.subr.mxu0 0.0
  %1730 = vmatpush2.msra.mxu0 0.0
  %1731 = vmatprep.subr.mxu0 0.0
  %1732 = vmatpush2.msra.mxu0 0.0
  %1733 = vmatprep.subr.mxu0 0.0
  %1734 = vmatpush2.msra.mxu0 0.0
  %1735 = vmatprep.subr.mxu0 0.0
  %1736 = vmatpush2.msra.mxu0 0.0
  %1737 = vmatprep.subr.mxu0 0.0
  %1738 = vmatpush2.msra.mxu0 0.0
  %1739 = vmatprep.subr.mxu0 0.0
  %1740 = vmatpush2.msra.mxu0 0.0
  %1741 = vmatprep.subr.mxu0 0.0
  %1742 = vmatpush2.msra.mxu0 0.0
  %1743 = vmatprep.mubr.f32.mxu0 0.0
  %1744 = vmatmul.mubr.f32.gmra.mxu0 %v1677
  %v1745 = vpop.f32.mrf.mxu0
  %v1746 = vadd.f32 0.0, %v1745
  %v1747 = vpop.f32.mrf.mxu0
  %1748 = vdwg.mxu0
  %v1749 = vadd.f32 %v1662, %v1746
  %vm1750 = vcmask 80896
  %1751 = vst.msk [vmem:[%s7] sm:$0xff] %vm1750, %v1749
  // Predicated region
  $region30: #{m2_forward.1} parent=0 // pred_check
    _
  $region31: #{m2_forward.1} parent=0 // pred_check_branch
    %1753 = sbr.rel (0) target = $region33
  $region32: #{m2_forward.1} parent=0 // pred_region
    _
  $region33: #{m2_forward.1} parent=0 // pred_fallthru
    _
  // Predicated region
  $region34: #{m2_forward.1} parent=0 // pred_check
    _
  $region35: #{m2_forward.1} parent=0 // pred_check_branch
    %1755 = sbr.rel (0) target = $region37
  $region36: #{m2_forward.1} parent=0 // pred_region
    _
  $region37: #{m2_forward.1} parent=0 // pred_fallthru
    _

</llo_original>
